<compile_context>
chip_gen: v5e
topology: v5e:2x2
jax: 0.10.0
libtpu: 0.0.40
codegen_flags: <defaults>
</compile_context>

<pallas_src>
import functools

import jax
import jax.numpy as jnp
from jax.experimental import pallas as pl
from jax.experimental.pallas import tpu as pltpu


# --------------------------------------------------------------------------
# small helpers (plain jnp -> lower on Mosaic and in interpret mode)
# --------------------------------------------------------------------------

_SALT_ATTN_PROBS = 0x1001
_SALT_ATTN_OUT = 0x2002
_SALT_FFN_HIDDEN = 0x3003
_SALT_FFN_OUT = 0x4004
_SALT_FINAL = 0x5005


def _hash_u32(x):
    """lowbias32-style integer mixer (uint32 in, uint32 out)."""
    x = x ^ (x >> jnp.uint32(16))
    x = x * jnp.uint32(0x7FEB352D)
    x = x ^ (x >> jnp.uint32(15))
    x = x * jnp.uint32(0x846CA68B)
    x = x ^ (x >> jnp.uint32(16))
    return x


def _dropout(x, p, seed_i32):
    """Training-mode dropout (mask + 1/(1-p) rescale) on a 2-D tile.

    Counter-based hash PRNG: unique per-element counter XOR a per-call seed,
    then an integer-threshold compare (no uint->f32 conversion on the VPU).
    """
    if p <= 0.0:
        return x
    rows, cols = x.shape
    r = jax.lax.broadcasted_iota(jnp.int32, (rows, cols), 0)
    c = jax.lax.broadcasted_iota(jnp.int32, (rows, cols), 1)
    idx = (r * jnp.int32(cols) + c).astype(jnp.uint32)
    bits = _hash_u32(idx ^ (seed_i32.astype(jnp.uint32) * jnp.uint32(0x9E3779B9)))
    bits31 = (bits >> jnp.uint32(1)).astype(jnp.int32)          # in [0, 2^31)
    thresh = min(int(round(p * (1 << 31))), (1 << 31) - 1)
    keep = bits31 >= jnp.int32(thresh)                          # P(keep) = 1 - p
    scale = jnp.asarray(1.0 / (1.0 - p), x.dtype)
    return jnp.where(keep, x * scale, jnp.zeros_like(x))


def _gelu(x):
    # BERT tanh-approx GELU (EUP tanh).
    c = jnp.float32(0.7978845608028654)   # sqrt(2/pi)
    return 0.5 * x * (1.0 + jnp.tanh(c * (x + 0.044715 * x * x * x)))


def _layernorm(x_f32, g, b, eps):
    mean = jnp.mean(x_f32, axis=-1, keepdims=True)
    xc = x_f32 - mean
    var = jnp.mean(xc * xc, axis=-1, keepdims=True)
    return g * (xc * jax.lax.rsqrt(var + eps)) + b


# --------------------------------------------------------------------------
# Kernel A: attention sublayer   y = x + dropout(MHA(LN1(x), mask))
# --------------------------------------------------------------------------

def _attn_sublayer_kernel(seed_ref, x_ref, mask_ref, g_ref, beta_ref,
                          wq_ref, bq_ref, wk_ref, bk_ref, wv_ref, bv_ref,
                          wo_ref, bo_ref, o_ref, *, num_heads, p, eps):
    b = pl.program_id(0)
    x = x_ref[0]                                   # (S, H), native dtype
    S, H = x.shape
    dk = H // num_heads

    normed = _layernorm(x.astype(jnp.float32),
                        g_ref[...].astype(jnp.float32),
                        beta_ref[...].astype(jnp.float32), eps)

    cd = wq_ref.dtype                              # MXU compute dtype (bf16)
    nb = normed.astype(cd)
    q = jnp.dot(nb, wq_ref[...], preferred_element_type=jnp.float32) \
        + bq_ref[...].astype(jnp.float32)
    k = jnp.dot(nb, wk_ref[...], preferred_element_type=jnp.float32) \
        + bk_ref[...].astype(jnp.float32)
    v = jnp.dot(nb, wv_ref[...], preferred_element_type=jnp.float32) \
        + bv_ref[...].astype(jnp.float32)

    maskf = mask_ref[0].astype(jnp.float32)        # (S, S), 1 = attend
    seed0 = seed_ref[0] + b * jnp.int32(1000003)   # per-batch seed mixing
    scale = jnp.float32(1.0 / (dk ** 0.5))

    # Per-head loop (static unroll). output_linear(concat(heads)) is computed
    # as sum_h ctx_h @ Wo[h*dk:(h+1)*dk, :] to avoid a lane concatenate.
    # TODO(synk): for long sequences, tile the query axis / go flash-style.
    attn_out = jnp.zeros((S, H), jnp.float32)
    for hh in range(num_heads):
        lo = hh * dk
        qh = q[:, lo:lo + dk].astype(cd)
        kh = k[:, lo:lo + dk].astype(cd)
        vh = v[:, lo:lo + dk].astype(cd)
        s = jnp.einsum("qd,kd->qk", qh, kh,
                       preferred_element_type=jnp.float32) * scale
        s = jnp.where(maskf > 0, s, jnp.float32(-1e9))
        s = s - jnp.max(s, axis=-1, keepdims=True)
        e = jnp.exp(s)
        p_attn = e / jnp.sum(e, axis=-1, keepdims=True)
        p_attn = _dropout(p_attn, p,
                          seed0 + jnp.int32(_SALT_ATTN_PROBS + 131 * hh))
        ctx = jnp.dot(p_attn.astype(cd), vh, preferred_element_type=jnp.float32)
        attn_out = attn_out + jnp.dot(ctx.astype(cd), wo_ref[lo:lo + dk, :],
                                      preferred_element_type=jnp.float32)
    attn_out = attn_out + bo_ref[...].astype(jnp.float32)
    attn_out = _dropout(attn_out, p, seed0 + jnp.int32(_SALT_ATTN_OUT))

    # residual add in the input's native dtype
    o_ref[0] = (x + attn_out.astype(x.dtype)).astype(o_ref.dtype)


def _attention_sublayer(x, mask, params, seed_arr, *, num_heads, p, eps):
    B, S, H = x.shape
    kernel = functools.partial(_attn_sublayer_kernel,
                               num_heads=num_heads, p=p, eps=eps)
    wbytes = params["wq"].dtype.itemsize
    cost = pl.CostEstimate(
        flops=B * (4 * 2 * S * H * H + 2 * 2 * S * S * H),
        transcendentals=B * num_heads * S * S + B * S,
        bytes_accessed=(2 * B * S * H * x.dtype.itemsize
                        + B * S * S * mask.dtype.itemsize
                        + 4 * H * H * wbytes))
    return pl.pallas_call(
        kernel,
        out_shape=jax.ShapeDtypeStruct((B, S, H), x.dtype),
        grid_spec=pltpu.PrefetchScalarGridSpec(
            num_scalar_prefetch=1,                 # seed lands in SMEM
            grid=(B,),
            in_specs=[
                pl.BlockSpec((1, S, H), lambda b, seed: (b, 0, 0)),   # x
                pl.BlockSpec((1, S, S), lambda b, seed: (b, 0, 0)),   # mask
                pl.BlockSpec((1, H), lambda b, seed: (0, 0)),         # ln1 gamma
                pl.BlockSpec((1, H), lambda b, seed: (0, 0)),         # ln1 beta
                pl.BlockSpec((H, H), lambda b, seed: (0, 0)),         # Wq
                pl.BlockSpec((1, H), lambda b, seed: (0, 0)),         # bq
                pl.BlockSpec((H, H), lambda b, seed: (0, 0)),         # Wk
                pl.BlockSpec((1, H), lambda b, seed: (0, 0)),         # bk
                pl.BlockSpec((H, H), lambda b, seed: (0, 0)),         # Wv
                pl.BlockSpec((1, H), lambda b, seed: (0, 0)),         # bv
                pl.BlockSpec((H, H), lambda b, seed: (0, 0)),         # Wo
                pl.BlockSpec((1, H), lambda b, seed: (0, 0)),         # bo
            ],
            out_specs=pl.BlockSpec((1, S, H), lambda b, seed: (b, 0, 0)),
        ),
        compiler_params=pltpu.CompilerParams(
            dimension_semantics=("parallel",)),    # independent per batch
        cost_estimate=cost,
    )(seed_arr, x, mask, params["ln1_g"], params["ln1_b"],
      params["wq"], params["bq"], params["wk"], params["bk"],
      params["wv"], params["bv"], params["wo"], params["bo"])


# --------------------------------------------------------------------------
# Kernel B: FFN sublayer + final dropout
#   y = dropout( x + dropout( W2 @ dropout(GELU(W1 @ LN2(x) + b1)) + b2 ) )
# --------------------------------------------------------------------------

def _ffn_sublayer_kernel(seed_ref, x_ref, g_ref, beta_ref,
                         w1_ref, b1_ref, w2_ref, b2_ref, o_ref, *, p, eps):
    i = pl.program_id(0)
    x = x_ref[...]                                 # (TM, H), native dtype
    normed = _layernorm(x.astype(jnp.float32),
                        g_ref[...].astype(jnp.float32),
                        beta_ref[...].astype(jnp.float32), eps)

    seed0 = seed_ref[0] + i * jnp.int32(7919)      # per-tile seed mixing

    cd = w1_ref.dtype                              # MXU compute dtype (bf16)
    h = jnp.dot(normed.astype(cd), w1_ref[...],
                preferred_element_type=jnp.float32) + b1_ref[...].astype(jnp.float32)
    h = _gelu(h)
    h = _dropout(h, p, seed0 + jnp.int32(_SALT_FFN_HIDDEN))   # FFN internal dropout
    out = jnp.dot(h.astype(cd), w2_ref[...],
                  preferred_element_type=jnp.float32) + b2_ref[...].astype(jnp.float32)
    out = _dropout(out, p, seed0 + jnp.int32(_SALT_FFN_OUT))  # sublayer dropout

    y = x + out.astype(x.dtype)                    # residual in native dtype
    y = _dropout(y, p, seed0 + jnp.int32(_SALT_FINAL))        # final block dropout
    o_ref[...] = y.astype(o_ref.dtype)


def _ffn_sublayer(x, params, seed_arr, *, p, eps):
    B, S, H = x.shape
    M = B * S
    F = params["w1"].shape[1]
    x2 = x.reshape(M, H)

    # Row tile: ~512 rows (multiple of 8) or the full slab if smaller.
    TM = M if M <= 512 else 512
    grid = (pl.cdiv(M, TM),)

    # Rough VMEM need: double-buffered activation tiles + resident weights.
    act = 2 * 2 * TM * max(H, F) * 4
    wgt = 2 * H * F * params["w1"].dtype.itemsize
    cp_kwargs = {}
    if act + wgt > 32 * 1024 * 1024:               # above default scoped VMEM
        cp_kwargs["vmem_limit_bytes"] = int(min((act + wgt) * 3 // 2,
                                                96 * 1024 * 1024))
    # TODO(synk): for very large H/F (v7x 64 MiB VMEM) also tile the N/K dims.

    cost = pl.CostEstimate(
        flops=4 * M * H * F,
        transcendentals=M * F + M,
        bytes_accessed=2 * M * H * x.dtype.itemsize
        + 2 * H * F * params["w1"].dtype.itemsize)

    kernel = functools.partial(_ffn_sublayer_kernel, p=p, eps=eps)
    out = pl.pallas_call(
        kernel,
        out_shape=jax.ShapeDtypeStruct((M, H), x.dtype),
        grid_spec=pltpu.PrefetchScalarGridSpec(
            num_scalar_prefetch=1,
            grid=grid,
            in_specs=[
                pl.BlockSpec((TM, H), lambda i, seed: (i, 0)),   # x (row-tiled)
                pl.BlockSpec((1, H), lambda i, seed: (0, 0)),    # ln2 gamma
                pl.BlockSpec((1, H), lambda i, seed: (0, 0)),    # ln2 beta
                pl.BlockSpec((H, F), lambda i, seed: (0, 0)),    # W1 (resident)
                pl.BlockSpec((1, F), lambda i, seed: (0, 0)),    # b1
                pl.BlockSpec((F, H), lambda i, seed: (0, 0)),    # W2 (resident)
                pl.BlockSpec((1, H), lambda i, seed: (0, 0)),    # b2
            ],
            out_specs=pl.BlockSpec((TM, H), lambda i, seed: (i, 0)),
        ),
        compiler_params=pltpu.CompilerParams(
            dimension_semantics=("parallel",), **cp_kwargs),
        cost_estimate=cost,
    )(seed_arr, x2, params["ln2_g"], params["ln2_b"],
      params["w1"], params["b1"], params["w2"], params["b2"])
    return out.reshape(B, S, H)


# --------------------------------------------------------------------------
# TransformerBlock forward
# --------------------------------------------------------------------------

def transformer_block(x, mask, params, *, num_heads, p=0.1, eps=1e-6, seed=0):
    """x: [B, S, H]; mask: [B, S, S] (1 = attend, 0 = masked)."""
    seed_arr = jnp.asarray([seed], dtype=jnp.int32)
    y = _attention_sublayer(x, mask, params, seed_arr,
                            num_heads=num_heads, p=p, eps=eps)
    y = _ffn_sublayer(y, params, seed_arr, p=p, eps=eps)
    return y


def init_params(key, hidden, d_ff, *, mxu_dtype=jnp.bfloat16):
    """Deterministic synthetic params. Matmul weights stored bf16 once here
    (fed straight to the MXU); LN params and biases stay f32."""
    ks = jax.random.split(key, 12)

    def lin_w(k, fan_in, fan_out):
        w = jax.random.normal(k, (fan_in, fan_out), jnp.float32)
        return (w / jnp.sqrt(jnp.float32(fan_in))).astype(mxu_dtype)

    def lin_b(k, fan_out):
        return 0.02 * jax.random.normal(k, (1, fan_out), jnp.float32)

    return dict(
        ln1_g=jnp.ones((1, hidden), jnp.float32),
        ln1_b=jnp.zeros((1, hidden), jnp.float32),
        ln2_g=jnp.ones((1, hidden), jnp.float32),
        ln2_b=jnp.zeros((1, hidden), jnp.float32),
        wq=lin_w(ks[0], hidden, hidden), bq=lin_b(ks[1], hidden),
        wk=lin_w(ks[2], hidden, hidden), bk=lin_b(ks[3], hidden),
        wv=lin_w(ks[4], hidden, hidden), bv=lin_b(ks[5], hidden),
        wo=lin_w(ks[6], hidden, hidden), bo=lin_b(ks[7], hidden),
        w1=lin_w(ks[8], hidden, d_ff),   b1=lin_b(ks[9], d_ff),
        w2=lin_w(ks[10], d_ff, hidden),  b2=lin_b(ks[11], hidden),
    )


# --------------------------------------------------------------------------
# Pure-JAX reference (dropout disabled) for the correctness check
# --------------------------------------------------------------------------

def _reference_block_no_dropout(x, mask, params, *, num_heads, eps=1e-6):
    B, S, H = x.shape
    dk = H // num_heads
    cd = params["wq"].dtype

    def ln(z, g, b):
        return _layernorm(z.astype(jnp.float32), g, b, eps)

    def lin(z, w, b):
        return jnp.dot(z.astype(w.dtype), w,
                       preferred_element_type=jnp.float32) + b

    n1 = ln(x, params["ln1_g"], params["ln1_b"])
    q = lin(n1, params["wq"], params["bq"]).reshape(B, S, num_heads, dk)
    k = lin(n1, params["wk"], params["bk"]).reshape(B, S, num_heads, dk)
    v = lin(n1, params["wv"], params["bv"]).reshape(B, S, num_heads, dk)
    s = jnp.einsum("bqhd,bkhd->bhqk", q.astype(cd), k.astype(cd),
                   preferred_element_type=jnp.float32) / jnp.sqrt(jnp.float32(dk))
    s = jnp.where(mask[:, None, :, :] > 0, s, jnp.float32(-1e9))
    p_attn = jax.nn.softmax(s, axis=-1)
    ctx = jnp.einsum("bhqk,bkhd->bqhd", p_attn.astype(cd), v.astype(cd),
                     preferred_element_type=jnp.float32).reshape(B, S, H)
    attn_out = jnp.dot(ctx.astype(cd), params["wo"],
                       preferred_element_type=jnp.float32) + params["bo"]
    y1 = x + attn_out.astype(x.dtype)

    n2 = ln(y1, params["ln2_g"], params["ln2_b"])
    h = _gelu(lin(n2, params["w1"], params["b1"]))
    out = jnp.dot(h.astype(params["w2"].dtype), params["w2"],
                  preferred_element_type=jnp.float32) + params["b2"]
    return y1 + out.astype(y1.dtype)


if __name__ == "__main__":
    key = jax.random.PRNGKey(0)
    B, S, H, HEADS = 2, 8, 32, 4
    F = 4 * H
    P = 0.1

    k_x, k_p = jax.random.split(key)
    x = jax.random.normal(k_x, (B, S, H), dtype=jnp.float32)

    # Padding-style attention mask (1 = attend, 0 = masked): mask out the
    # last two key positions of the second batch element.
    mask = jnp.ones((B, S, S), jnp.float32)
    mask = mask.at[1, :, S - 2:].set(0.0)

    params = init_params(k_p, H, F)

    # Deterministic path (dropout off) vs pure-JAX reference.
    out0 = transformer_block(x, mask, params, num_heads=HEADS, p=0.0)
    jax.block_until_ready(out0)
    ref0 = _reference_block_no_dropout(x, mask, params, num_heads=HEADS)
    assert out0.shape == (B, S, H)
    assert jnp.allclose(out0, ref0, atol=2e-2, rtol=2e-2), "mismatch vs reference"

    # Training path (dropout on, per-tile hashed masks).
    out = transformer_block(x, mask, params, num_heads=HEADS, p=P, seed=1234)
    jax.block_until_ready(out)
    assert out.shape == (B, S, H)
    assert bool(jnp.all(jnp.isfinite(out)))

    print("KERNEL_OK")
</pallas_src>

<mosaic_0001>
module attributes {stable_mosaic.version = 11 : i64} {
  func.func @_attn_sublayer_kernel(%arg0: i32, %arg1: memref<1xi32, #tpu.memory_space<smem>>, %arg2: memref<1x8x32xf32, #tpu.memory_space<vmem>>, %arg3: memref<1x8x8xf32, #tpu.memory_space<vmem>>, %arg4: memref<1x32xf32, #tpu.memory_space<vmem>>, %arg5: memref<1x32xf32, #tpu.memory_space<vmem>>, %arg6: memref<32x32xbf16, #tpu.memory_space<vmem>>, %arg7: memref<1x32xf32, #tpu.memory_space<vmem>>, %arg8: memref<32x32xbf16, #tpu.memory_space<vmem>>, %arg9: memref<1x32xf32, #tpu.memory_space<vmem>>, %arg10: memref<32x32xbf16, #tpu.memory_space<vmem>>, %arg11: memref<1x32xf32, #tpu.memory_space<vmem>>, %arg12: memref<32x32xbf16, #tpu.memory_space<vmem>>, %arg13: memref<1x32xf32, #tpu.memory_space<vmem>>, %arg14: memref<1x8x32xf32, #tpu.memory_space<vmem>>) attributes {dimension_semantics = [#tpu.dimension_semantics<parallel>], iteration_bounds = array<i64: 2>, scalar_prefetch = 1 : i64, scratch_operands = 0 : i64, tpu.core_type = #tpu.core_type<tc>, window_params = [{transform_indices = @transform_0, window_bounds = array<i64: 1, 8, 32>}, {transform_indices = @transform_1, window_bounds = array<i64: 1, 8, 8>}, {pipeline_mode = #tpu.pipeline_mode<synchronous>, transform_indices = @transform_2, window_bounds = array<i64: 1, 32>}, {pipeline_mode = #tpu.pipeline_mode<synchronous>, transform_indices = @transform_3, window_bounds = array<i64: 1, 32>}, {pipeline_mode = #tpu.pipeline_mode<synchronous>, transform_indices = @transform_4, window_bounds = array<i64: 32, 32>}, {pipeline_mode = #tpu.pipeline_mode<synchronous>, transform_indices = @transform_5, window_bounds = array<i64: 1, 32>}, {pipeline_mode = #tpu.pipeline_mode<synchronous>, transform_indices = @transform_6, window_bounds = array<i64: 32, 32>}, {pipeline_mode = #tpu.pipeline_mode<synchronous>, transform_indices = @transform_7, window_bounds = array<i64: 1, 32>}, {pipeline_mode = #tpu.pipeline_mode<synchronous>, transform_indices = @transform_8, window_bounds = array<i64: 32, 32>}, {pipeline_mode = #tpu.pipeline_mode<synchronous>, transform_indices = @transform_9, window_bounds = array<i64: 1, 32>}, {pipeline_mode = #tpu.pipeline_mode<synchronous>, transform_indices = @transform_10, window_bounds = array<i64: 32, 32>}, {pipeline_mode = #tpu.pipeline_mode<synchronous>, transform_indices = @transform_11, window_bounds = array<i64: 1, 32>}, {transform_indices = @transform_12, window_bounds = array<i64: 1, 8, 32>}]} {
    %c0 = arith.constant 0 : index
    %c0_0 = arith.constant 0 : index
    %c0_1 = arith.constant 0 : index
    %0 = vector.load %arg2[%c0, %c0_0, %c0_1] : memref<1x8x32xf32, #tpu.memory_space<vmem>>, vector<1x8x32xf32>
    %1 = vector.shape_cast %0 : vector<1x8x32xf32> to vector<8x32xf32>
    %c0_2 = arith.constant 0 : index
    %c0_3 = arith.constant 0 : index
    %2 = vector.load %arg4[%c0_2, %c0_3] : memref<1x32xf32, #tpu.memory_space<vmem>>, vector<1x32xf32>
    %c0_4 = arith.constant 0 : index
    %c0_5 = arith.constant 0 : index
    %3 = vector.load %arg5[%c0_4, %c0_5] : memref<1x32xf32, #tpu.memory_space<vmem>>, vector<1x32xf32>
    %cst = arith.constant dense<0.000000e+00> : vector<8xf32>
    %4 = vector.multi_reduction <add>, %1, %cst [1] : vector<8x32xf32> to vector<8xf32>
    %5 = vector.shape_cast %4 : vector<8xf32> to vector<8x1xf32>
    %cst_6 = arith.constant 3.200000e+01 : f32
    %6 = vector.broadcast %cst_6 : f32 to vector<8x1xf32>
    %7 = arith.divf %5, %6 : vector<8x1xf32>
    %8 = vector.broadcast %7 : vector<8x1xf32> to vector<8x32xf32>
    %9 = arith.subf %1, %8 : vector<8x32xf32>
    %10 = arith.mulf %9, %9 : vector<8x32xf32>
    %cst_7 = arith.constant dense<0.000000e+00> : vector<8xf32>
    %11 = vector.multi_reduction <add>, %10, %cst_7 [1] : vector<8x32xf32> to vector<8xf32>
    %12 = vector.shape_cast %11 : vector<8xf32> to vector<8x1xf32>
    %cst_8 = arith.constant 3.200000e+01 : f32
    %13 = vector.broadcast %cst_8 : f32 to vector<8x1xf32>
    %14 = arith.divf %12, %13 : vector<8x1xf32>
    %cst_9 = arith.constant 9.99999997E-7 : f32
    %15 = vector.broadcast %cst_9 : f32 to vector<8x1xf32>
    %16 = arith.addf %14, %15 : vector<8x1xf32>
    %17 = math.rsqrt %16 : vector<8x1xf32>
    %18 = vector.broadcast %17 : vector<8x1xf32> to vector<8x32xf32>
    %19 = arith.mulf %9, %18 : vector<8x32xf32>
    %20 = vector.broadcast %2 : vector<1x32xf32> to vector<8x32xf32>
    %21 = arith.mulf %20, %19 : vector<8x32xf32>
    %22 = vector.broadcast %3 : vector<1x32xf32> to vector<8x32xf32>
    %23 = arith.addf %21, %22 : vector<8x32xf32>
    %24 = arith.truncf %23 : vector<8x32xf32> to vector<8x32xbf16>
    %c0_10 = arith.constant 0 : index
    %c0_11 = arith.constant 0 : index
    %25 = vector.load %arg6[%c0_10, %c0_11] : memref<32x32xbf16, #tpu.memory_space<vmem>>, vector<32x32xbf16>
    %cst_12 = arith.constant dense<0.000000e+00> : vector<8x32xf32>
    %26 = tpu.matmul %24, %25, %cst_12 {dimension_numbers = #tpu.dot_dimension_numbers<[1], [0], [0], [1], [0, 0, 1, 1], [], []>} : vector<8x32xbf16>, vector<32x32xbf16>, vector<8x32xf32> -> vector<8x32xf32>
    %c0_13 = arith.constant 0 : index
    %c0_14 = arith.constant 0 : index
    %27 = vector.load %arg7[%c0_13, %c0_14] : memref<1x32xf32, #tpu.memory_space<vmem>>, vector<1x32xf32>
    %28 = vector.broadcast %27 : vector<1x32xf32> to vector<8x32xf32>
    %29 = arith.addf %26, %28 : vector<8x32xf32>
    %c0_15 = arith.constant 0 : index
    %c0_16 = arith.constant 0 : index
    %30 = vector.load %arg8[%c0_15, %c0_16] : memref<32x32xbf16, #tpu.memory_space<vmem>>, vector<32x32xbf16>
    %cst_17 = arith.constant dense<0.000000e+00> : vector<8x32xf32>
    %31 = tpu.matmul %24, %30, %cst_17 {dimension_numbers = #tpu.dot_dimension_numbers<[1], [0], [0], [1], [0, 0, 1, 1], [], []>} : vector<8x32xbf16>, vector<32x32xbf16>, vector<8x32xf32> -> vector<8x32xf32>
    %c0_18 = arith.constant 0 : index
    %c0_19 = arith.constant 0 : index
    %32 = vector.load %arg9[%c0_18, %c0_19] : memref<1x32xf32, #tpu.memory_space<vmem>>, vector<1x32xf32>
    %33 = vector.broadcast %32 : vector<1x32xf32> to vector<8x32xf32>
    %34 = arith.addf %31, %33 : vector<8x32xf32>
    %c0_20 = arith.constant 0 : index
    %c0_21 = arith.constant 0 : index
    %35 = vector.load %arg10[%c0_20, %c0_21] : memref<32x32xbf16, #tpu.memory_space<vmem>>, vector<32x32xbf16>
    %cst_22 = arith.constant dense<0.000000e+00> : vector<8x32xf32>
    %36 = tpu.matmul %24, %35, %cst_22 {dimension_numbers = #tpu.dot_dimension_numbers<[1], [0], [0], [1], [0, 0, 1, 1], [], []>} : vector<8x32xbf16>, vector<32x32xbf16>, vector<8x32xf32> -> vector<8x32xf32>
    %c0_23 = arith.constant 0 : index
    %c0_24 = arith.constant 0 : index
    %37 = vector.load %arg11[%c0_23, %c0_24] : memref<1x32xf32, #tpu.memory_space<vmem>>, vector<1x32xf32>
    %38 = vector.broadcast %37 : vector<1x32xf32> to vector<8x32xf32>
    %39 = arith.addf %36, %38 : vector<8x32xf32>
    %c0_25 = arith.constant 0 : index
    %c0_26 = arith.constant 0 : index
    %c0_27 = arith.constant 0 : index
    %40 = vector.load %arg3[%c0_25, %c0_26, %c0_27] : memref<1x8x8xf32, #tpu.memory_space<vmem>>, vector<1x8x8xf32>
    %41 = vector.shape_cast %40 : vector<1x8x8xf32> to vector<8x8xf32>
    %cst_28 = arith.constant 0.000000e+00 : f32
    %42 = vector.broadcast %cst_28 : f32 to vector<8x32xf32>
    %43 = vector.extract_strided_slice %29 {offsets = [0, 0], sizes = [8, 8], strides = [1, 1]} : vector<8x32xf32> to vector<8x8xf32>
    %44 = arith.truncf %43 : vector<8x8xf32> to vector<8x8xbf16>
    %45 = vector.extract_strided_slice %34 {offsets = [0, 0], sizes = [8, 8], strides = [1, 1]} : vector<8x32xf32> to vector<8x8xf32>
    %46 = arith.truncf %45 : vector<8x8xf32> to vector<8x8xbf16>
    %47 = vector.extract_strided_slice %39 {offsets = [0, 0], sizes = [8, 8], strides = [1, 1]} : vector<8x32xf32> to vector<8x8xf32>
    %48 = arith.truncf %47 : vector<8x8xf32> to vector<8x8xbf16>
    "tpu.trace_start"() <{level = 10 : i32, message = "qd,kd->qk"}> : () -> ()
    %cst_29 = arith.constant dense<0.000000e+00> : vector<8x8xf32>
    %49 = tpu.matmul %44, %46, %cst_29 {dimension_numbers = #tpu.dot_dimension_numbers<[1], [1], [0], [0], [0, 0, 1, 0], [], []>} : vector<8x8xbf16>, vector<8x8xbf16>, vector<8x8xf32> -> vector<8x8xf32>
    "tpu.trace_stop"() : () -> ()
    %cst_30 = arith.constant 0.353553385 : f32
    %50 = vector.broadcast %cst_30 : f32 to vector<8x8xf32>
    %51 = arith.mulf %49, %50 : vector<8x8xf32>
    %cst_31 = arith.constant 0.000000e+00 : f32
    %52 = vector.broadcast %cst_31 : f32 to vector<8x8xf32>
    %53 = arith.cmpf ogt, %41, %52 : vector<8x8xf32>
    %cst_32 = arith.constant -1.000000e+09 : f32
    %54 = vector.broadcast %cst_32 : f32 to vector<8x8xf32>
    %55 = arith.select %53, %51, %54 : vector<8x8xi1>, vector<8x8xf32>
    %cst_33 = arith.constant dense<0xFF800000> : vector<8xf32>
    %56 = vector.multi_reduction <maximumf>, %55, %cst_33 [1] : vector<8x8xf32> to vector<8xf32>
    %57 = vector.shape_cast %56 : vector<8xf32> to vector<8x1xf32>
    %58 = vector.broadcast %57 : vector<8x1xf32> to vector<8x8xf32>
    %59 = arith.subf %55, %58 : vector<8x8xf32>
    %60 = math.exp %59 : vector<8x8xf32>
    %cst_34 = arith.constant dense<0.000000e+00> : vector<8xf32>
    %61 = vector.multi_reduction <add>, %60, %cst_34 [1] : vector<8x8xf32> to vector<8xf32>
    %62 = vector.shape_cast %61 : vector<8xf32> to vector<8x1xf32>
    %63 = vector.broadcast %62 : vector<8x1xf32> to vector<8x8xf32>
    %64 = arith.divf %60, %63 : vector<8x8xf32>
    %65 = arith.truncf %64 : vector<8x8xf32> to vector<8x8xbf16>
    %cst_35 = arith.constant dense<0.000000e+00> : vector<8x8xf32>
    %66 = tpu.matmul %65, %48, %cst_35 {dimension_numbers = #tpu.dot_dimension_numbers<[1], [0], [0], [1], [0, 0, 1, 1], [], []>} : vector<8x8xbf16>, vector<8x8xbf16>, vector<8x8xf32> -> vector<8x8xf32>
    %67 = arith.truncf %66 : vector<8x8xf32> to vector<8x8xbf16>
    %c0_36 = arith.constant 0 : index
    %c0_37 = arith.constant 0 : index
    %68 = vector.load %arg12[%c0_36, %c0_37] : memref<32x32xbf16, #tpu.memory_space<vmem>>, vector<8x32xbf16>
    %cst_38 = arith.constant dense<0.000000e+00> : vector<8x32xf32>
    %69 = tpu.matmul %67, %68, %cst_38 {dimension_numbers = #tpu.dot_dimension_numbers<[1], [0], [0], [1], [0, 0, 1, 1], [], []>} : vector<8x8xbf16>, vector<8x32xbf16>, vector<8x32xf32> -> vector<8x32xf32>
    %70 = arith.addf %42, %69 : vector<8x32xf32>
    %71 = vector.extract_strided_slice %29 {offsets = [0, 8], sizes = [8, 8], strides = [1, 1]} : vector<8x32xf32> to vector<8x8xf32>
    %72 = arith.truncf %71 : vector<8x8xf32> to vector<8x8xbf16>
    %73 = vector.extract_strided_slice %34 {offsets = [0, 8], sizes = [8, 8], strides = [1, 1]} : vector<8x32xf32> to vector<8x8xf32>
    %74 = arith.truncf %73 : vector<8x8xf32> to vector<8x8xbf16>
    %75 = vector.extract_strided_slice %39 {offsets = [0, 8], sizes = [8, 8], strides = [1, 1]} : vector<8x32xf32> to vector<8x8xf32>
    %76 = arith.truncf %75 : vector<8x8xf32> to vector<8x8xbf16>
    "tpu.trace_start"() <{level = 10 : i32, message = "qd,kd->qk"}> : () -> ()
    %cst_39 = arith.constant dense<0.000000e+00> : vector<8x8xf32>
    %77 = tpu.matmul %72, %74, %cst_39 {dimension_numbers = #tpu.dot_dimension_numbers<[1], [1], [0], [0], [0, 0, 1, 0], [], []>} : vector<8x8xbf16>, vector<8x8xbf16>, vector<8x8xf32> -> vector<8x8xf32>
    "tpu.trace_stop"() : () -> ()
    %cst_40 = arith.constant 0.353553385 : f32
    %78 = vector.broadcast %cst_40 : f32 to vector<8x8xf32>
    %79 = arith.mulf %77, %78 : vector<8x8xf32>
    %cst_41 = arith.constant 0.000000e+00 : f32
    %80 = vector.broadcast %cst_41 : f32 to vector<8x8xf32>
    %81 = arith.cmpf ogt, %41, %80 : vector<8x8xf32>
    %cst_42 = arith.constant -1.000000e+09 : f32
    %82 = vector.broadcast %cst_42 : f32 to vector<8x8xf32>
    %83 = arith.select %81, %79, %82 : vector<8x8xi1>, vector<8x8xf32>
    %cst_43 = arith.constant dense<0xFF800000> : vector<8xf32>
    %84 = vector.multi_reduction <maximumf>, %83, %cst_43 [1] : vector<8x8xf32> to vector<8xf32>
    %85 = vector.shape_cast %84 : vector<8xf32> to vector<8x1xf32>
    %86 = vector.broadcast %85 : vector<8x1xf32> to vector<8x8xf32>
    %87 = arith.subf %83, %86 : vector<8x8xf32>
    %88 = math.exp %87 : vector<8x8xf32>
    %cst_44 = arith.constant dense<0.000000e+00> : vector<8xf32>
    %89 = vector.multi_reduction <add>, %88, %cst_44 [1] : vector<8x8xf32> to vector<8xf32>
    %90 = vector.shape_cast %89 : vector<8xf32> to vector<8x1xf32>
    %91 = vector.broadcast %90 : vector<8x1xf32> to vector<8x8xf32>
    %92 = arith.divf %88, %91 : vector<8x8xf32>
    %93 = arith.truncf %92 : vector<8x8xf32> to vector<8x8xbf16>
    %cst_45 = arith.constant dense<0.000000e+00> : vector<8x8xf32>
    %94 = tpu.matmul %93, %76, %cst_45 {dimension_numbers = #tpu.dot_dimension_numbers<[1], [0], [0], [1], [0, 0, 1, 1], [], []>} : vector<8x8xbf16>, vector<8x8xbf16>, vector<8x8xf32> -> vector<8x8xf32>
    %95 = arith.truncf %94 : vector<8x8xf32> to vector<8x8xbf16>
    %c8 = arith.constant 8 : index
    %c0_46 = arith.constant 0 : index
    %96 = vector.load %arg12[%c8, %c0_46] : memref<32x32xbf16, #tpu.memory_space<vmem>>, vector<8x32xbf16>
    %cst_47 = arith.constant dense<0.000000e+00> : vector<8x32xf32>
    %97 = tpu.matmul %95, %96, %cst_47 {dimension_numbers = #tpu.dot_dimension_numbers<[1], [0], [0], [1], [0, 0, 1, 1], [], []>} : vector<8x8xbf16>, vector<8x32xbf16>, vector<8x32xf32> -> vector<8x32xf32>
    %98 = arith.addf %70, %97 : vector<8x32xf32>
    %99 = vector.extract_strided_slice %29 {offsets = [0, 16], sizes = [8, 8], strides = [1, 1]} : vector<8x32xf32> to vector<8x8xf32>
    %100 = arith.truncf %99 : vector<8x8xf32> to vector<8x8xbf16>
    %101 = vector.extract_strided_slice %34 {offsets = [0, 16], sizes = [8, 8], strides = [1, 1]} : vector<8x32xf32> to vector<8x8xf32>
    %102 = arith.truncf %101 : vector<8x8xf32> to vector<8x8xbf16>
    %103 = vector.extract_strided_slice %39 {offsets = [0, 16], sizes = [8, 8], strides = [1, 1]} : vector<8x32xf32> to vector<8x8xf32>
    %104 = arith.truncf %103 : vector<8x8xf32> to vector<8x8xbf16>
    "tpu.trace_start"() <{level = 10 : i32, message = "qd,kd->qk"}> : () -> ()
    %cst_48 = arith.constant dense<0.000000e+00> : vector<8x8xf32>
    %105 = tpu.matmul %100, %102, %cst_48 {dimension_numbers = #tpu.dot_dimension_numbers<[1], [1], [0], [0], [0, 0, 1, 0], [], []>} : vector<8x8xbf16>, vector<8x8xbf16>, vector<8x8xf32> -> vector<8x8xf32>
    "tpu.trace_stop"() : () -> ()
    %cst_49 = arith.constant 0.353553385 : f32
    %106 = vector.broadcast %cst_49 : f32 to vector<8x8xf32>
    %107 = arith.mulf %105, %106 : vector<8x8xf32>
    %cst_50 = arith.constant 0.000000e+00 : f32
    %108 = vector.broadcast %cst_50 : f32 to vector<8x8xf32>
    %109 = arith.cmpf ogt, %41, %108 : vector<8x8xf32>
    %cst_51 = arith.constant -1.000000e+09 : f32
    %110 = vector.broadcast %cst_51 : f32 to vector<8x8xf32>
    %111 = arith.select %109, %107, %110 : vector<8x8xi1>, vector<8x8xf32>
    %cst_52 = arith.constant dense<0xFF800000> : vector<8xf32>
    %112 = vector.multi_reduction <maximumf>, %111, %cst_52 [1] : vector<8x8xf32> to vector<8xf32>
    %113 = vector.shape_cast %112 : vector<8xf32> to vector<8x1xf32>
    %114 = vector.broadcast %113 : vector<8x1xf32> to vector<8x8xf32>
    %115 = arith.subf %111, %114 : vector<8x8xf32>
    %116 = math.exp %115 : vector<8x8xf32>
    %cst_53 = arith.constant dense<0.000000e+00> : vector<8xf32>
    %117 = vector.multi_reduction <add>, %116, %cst_53 [1] : vector<8x8xf32> to vector<8xf32>
    %118 = vector.shape_cast %117 : vector<8xf32> to vector<8x1xf32>
    %119 = vector.broadcast %118 : vector<8x1xf32> to vector<8x8xf32>
    %120 = arith.divf %116, %119 : vector<8x8xf32>
    %121 = arith.truncf %120 : vector<8x8xf32> to vector<8x8xbf16>
    %cst_54 = arith.constant dense<0.000000e+00> : vector<8x8xf32>
    %122 = tpu.matmul %121, %104, %cst_54 {dimension_numbers = #tpu.dot_dimension_numbers<[1], [0], [0], [1], [0, 0, 1, 1], [], []>} : vector<8x8xbf16>, vector<8x8xbf16>, vector<8x8xf32> -> vector<8x8xf32>
    %123 = arith.truncf %122 : vector<8x8xf32> to vector<8x8xbf16>
    %c16 = arith.constant 16 : index
    %c0_55 = arith.constant 0 : index
    %124 = vector.load %arg12[%c16, %c0_55] : memref<32x32xbf16, #tpu.memory_space<vmem>>, vector<8x32xbf16>
    %cst_56 = arith.constant dense<0.000000e+00> : vector<8x32xf32>
    %125 = tpu.matmul %123, %124, %cst_56 {dimension_numbers = #tpu.dot_dimension_numbers<[1], [0], [0], [1], [0, 0, 1, 1], [], []>} : vector<8x8xbf16>, vector<8x32xbf16>, vector<8x32xf32> -> vector<8x32xf32>
    %126 = arith.addf %98, %125 : vector<8x32xf32>
    %127 = vector.extract_strided_slice %29 {offsets = [0, 24], sizes = [8, 8], strides = [1, 1]} : vector<8x32xf32> to vector<8x8xf32>
    %128 = arith.truncf %127 : vector<8x8xf32> to vector<8x8xbf16>
    %129 = vector.extract_strided_slice %34 {offsets = [0, 24], sizes = [8, 8], strides = [1, 1]} : vector<8x32xf32> to vector<8x8xf32>
    %130 = arith.truncf %129 : vector<8x8xf32> to vector<8x8xbf16>
    %131 = vector.extract_strided_slice %39 {offsets = [0, 24], sizes = [8, 8], strides = [1, 1]} : vector<8x32xf32> to vector<8x8xf32>
    %132 = arith.truncf %131 : vector<8x8xf32> to vector<8x8xbf16>
    "tpu.trace_start"() <{level = 10 : i32, message = "qd,kd->qk"}> : () -> ()
    %cst_57 = arith.constant dense<0.000000e+00> : vector<8x8xf32>
    %133 = tpu.matmul %128, %130, %cst_57 {dimension_numbers = #tpu.dot_dimension_numbers<[1], [1], [0], [0], [0, 0, 1, 0], [], []>} : vector<8x8xbf16>, vector<8x8xbf16>, vector<8x8xf32> -> vector<8x8xf32>
    "tpu.trace_stop"() : () -> ()
    %cst_58 = arith.constant 0.353553385 : f32
    %134 = vector.broadcast %cst_58 : f32 to vector<8x8xf32>
    %135 = arith.mulf %133, %134 : vector<8x8xf32>
    %cst_59 = arith.constant 0.000000e+00 : f32
    %136 = vector.broadcast %cst_59 : f32 to vector<8x8xf32>
    %137 = arith.cmpf ogt, %41, %136 : vector<8x8xf32>
    %cst_60 = arith.constant -1.000000e+09 : f32
    %138 = vector.broadcast %cst_60 : f32 to vector<8x8xf32>
    %139 = arith.select %137, %135, %138 : vector<8x8xi1>, vector<8x8xf32>
    %cst_61 = arith.constant dense<0xFF800000> : vector<8xf32>
    %140 = vector.multi_reduction <maximumf>, %139, %cst_61 [1] : vector<8x8xf32> to vector<8xf32>
    %141 = vector.shape_cast %140 : vector<8xf32> to vector<8x1xf32>
    %142 = vector.broadcast %141 : vector<8x1xf32> to vector<8x8xf32>
    %143 = arith.subf %139, %142 : vector<8x8xf32>
    %144 = math.exp %143 : vector<8x8xf32>
    %cst_62 = arith.constant dense<0.000000e+00> : vector<8xf32>
    %145 = vector.multi_reduction <add>, %144, %cst_62 [1] : vector<8x8xf32> to vector<8xf32>
    %146 = vector.shape_cast %145 : vector<8xf32> to vector<8x1xf32>
    %147 = vector.broadcast %146 : vector<8x1xf32> to vector<8x8xf32>
    %148 = arith.divf %144, %147 : vector<8x8xf32>
    %149 = arith.truncf %148 : vector<8x8xf32> to vector<8x8xbf16>
    %cst_63 = arith.constant dense<0.000000e+00> : vector<8x8xf32>
    %150 = tpu.matmul %149, %132, %cst_63 {dimension_numbers = #tpu.dot_dimension_numbers<[1], [0], [0], [1], [0, 0, 1, 1], [], []>} : vector<8x8xbf16>, vector<8x8xbf16>, vector<8x8xf32> -> vector<8x8xf32>
    %151 = arith.truncf %150 : vector<8x8xf32> to vector<8x8xbf16>
    %c24 = arith.constant 24 : index
    %c0_64 = arith.constant 0 : index
    %152 = vector.load %arg12[%c24, %c0_64] : memref<32x32xbf16, #tpu.memory_space<vmem>>, vector<8x32xbf16>
    %cst_65 = arith.constant dense<0.000000e+00> : vector<8x32xf32>
    %153 = tpu.matmul %151, %152, %cst_65 {dimension_numbers = #tpu.dot_dimension_numbers<[1], [0], [0], [1], [0, 0, 1, 1], [], []>} : vector<8x8xbf16>, vector<8x32xbf16>, vector<8x32xf32> -> vector<8x32xf32>
    %154 = arith.addf %126, %153 : vector<8x32xf32>
    %c0_66 = arith.constant 0 : index
    %c0_67 = arith.constant 0 : index
    %155 = vector.load %arg13[%c0_66, %c0_67] : memref<1x32xf32, #tpu.memory_space<vmem>>, vector<1x32xf32>
    %156 = vector.broadcast %155 : vector<1x32xf32> to vector<8x32xf32>
    %157 = arith.addf %154, %156 : vector<8x32xf32>
    %158 = arith.addf %1, %157 : vector<8x32xf32>
    %c0_68 = arith.constant 0 : index
    %c0_69 = arith.constant 0 : index
    %c0_70 = arith.constant 0 : index
    %159 = vector.load %arg14[%c0_68, %c0_69, %c0_70] : memref<1x8x32xf32, #tpu.memory_space<vmem>>, vector<1x8x32xf32>
    %160 = vector.shape_cast %159 : vector<1x8x32xf32> to vector<8x32xf32>
    %161 = vector.shape_cast %158 : vector<8x32xf32> to vector<1x8x32xf32>
    tpu.vector_store %arg14[%c0_68, %c0_69, %c0_70], %161 {strides = array<i32>} : memref<1x8x32xf32, #tpu.memory_space<vmem>>, vector<1x8x32xf32>,
    return
  }
  func.func @transform_0(%arg0: i32, %arg1: memref<1xi32, #tpu.memory_space<smem>>) -> (i32, i32, i32) {
    %c0_i32 = arith.constant 0 : i32
    %c0_i32_0 = arith.constant 0 : i32
    %c0_i32_1 = arith.constant 0 : i32
    return %arg0, %c0_i32, %c0_i32_0 : i32, i32, i32
  }
  func.func @transform_1(%arg0: i32, %arg1: memref<1xi32, #tpu.memory_space<smem>>) -> (i32, i32, i32) {
    %c0_i32 = arith.constant 0 : i32
    %c0_i32_0 = arith.constant 0 : i32
    %c0_i32_1 = arith.constant 0 : i32
    return %arg0, %c0_i32, %c0_i32_0 : i32, i32, i32
  }
  func.func @transform_2(%arg0: i32, %arg1: memref<1xi32, #tpu.memory_space<smem>>) -> (i32, i32) {
    %c0_i32 = arith.constant 0 : i32
    %c0_i32_0 = arith.constant 0 : i32
    %c0_i32_1 = arith.constant 0 : i32
    return %c0_i32, %c0_i32_0 : i32, i32
  }
  func.func @transform_3(%arg0: i32, %arg1: memref<1xi32, #tpu.memory_space<smem>>) -> (i32, i32) {
    %c0_i32 = arith.constant 0 : i32
    %c0_i32_0 = arith.constant 0 : i32
    %c0_i32_1 = arith.constant 0 : i32
    return %c0_i32, %c0_i32_0 : i32, i32
  }
  func.func @transform_4(%arg0: i32, %arg1: memref<1xi32, #tpu.memory_space<smem>>) -> (i32, i32) {
    %c0_i32 = arith.constant 0 : i32
    %c0_i32_0 = arith.constant 0 : i32
    %c0_i32_1 = arith.constant 0 : i32
    return %c0_i32, %c0_i32_0 : i32, i32
  }
  func.func @transform_5(%arg0: i32, %arg1: memref<1xi32, #tpu.memory_space<smem>>) -> (i32, i32) {
    %c0_i32 = arith.constant 0 : i32
    %c0_i32_0 = arith.constant 0 : i32
    %c0_i32_1 = arith.constant 0 : i32
    return %c0_i32, %c0_i32_0 : i32, i32
  }
  func.func @transform_6(%arg0: i32, %arg1: memref<1xi32, #tpu.memory_space<smem>>) -> (i32, i32) {
    %c0_i32 = arith.constant 0 : i32
    %c0_i32_0 = arith.constant 0 : i32
    %c0_i32_1 = arith.constant 0 : i32
    return %c0_i32, %c0_i32_0 : i32, i32
  }
  func.func @transform_7(%arg0: i32, %arg1: memref<1xi32, #tpu.memory_space<smem>>) -> (i32, i32) {
    %c0_i32 = arith.constant 0 : i32
    %c0_i32_0 = arith.constant 0 : i32
    %c0_i32_1 = arith.constant 0 : i32
    return %c0_i32, %c0_i32_0 : i32, i32
  }
  func.func @transform_8(%arg0: i32, %arg1: memref<1xi32, #tpu.memory_space<smem>>) -> (i32, i32) {
    %c0_i32 = arith.constant 0 : i32
    %c0_i32_0 = arith.constant 0 : i32
    %c0_i32_1 = arith.constant 0 : i32
    return %c0_i32, %c0_i32_0 : i32, i32
  }
  func.func @transform_9(%arg0: i32, %arg1: memref<1xi32, #tpu.memory_space<smem>>) -> (i32, i32) {
    %c0_i32 = arith.constant 0 : i32
    %c0_i32_0 = arith.constant 0 : i32
    %c0_i32_1 = arith.constant 0 : i32
    return %c0_i32, %c0_i32_0 : i32, i32
  }
  func.func @transform_10(%arg0: i32, %arg1: memref<1xi32, #tpu.memory_space<smem>>) -> (i32, i32) {
    %c0_i32 = arith.constant 0 : i32
    %c0_i32_0 = arith.constant 0 : i32
    %c0_i32_1 = arith.constant 0 : i32
    return %c0_i32, %c0_i32_0 : i32, i32
  }
  func.func @transform_11(%arg0: i32, %arg1: memref<1xi32, #tpu.memory_space<smem>>) -> (i32, i32) {
    %c0_i32 = arith.constant 0 : i32
    %c0_i32_0 = arith.constant 0 : i32
    %c0_i32_1 = arith.constant 0 : i32
    return %c0_i32, %c0_i32_0 : i32, i32
  }
  func.func @transform_12(%arg0: i32, %arg1: memref<1xi32, #tpu.memory_space<smem>>) -> (i32, i32, i32) {
    %c0_i32 = arith.constant 0 : i32
    %c0_i32_0 = arith.constant 0 : i32
    %c0_i32_1 = arith.constant 0 : i32
    return %arg0, %c0_i32, %c0_i32_0 : i32, i32, i32
  }
}

</mosaic_0001>

<llo_original>
// kernel: tpu_custom_call.1
$region0: #{tpu_custom_call.1}
  #allocation0 [shape = 'u32[]', space=smem, size = 0x4, offset = 0x4, fixed_abs, tag = 'smem constant byte address 0x4 - core index']
  #allocation1 [shape = 'u32[72,128]{1,0:T(1,128)}', space=vmem, size = 0x9000, scoped, tag = 'internal scratch']
  #allocation2 [shape = 's32[1]{0}', space=sflag, size = 0x4, scoped, tag = 'scoped memory for tpu_custom_call.1']
  #allocation3 [shape = 's32[1]{0:T(128)S(6)}', space=smem, size = 0x200, scoped, tag = 'prefetched SMEM operand 0']
  %s0 = inlined_call_operand.<no memory space> [shape: s32[1], index: 0, kind: input, shape index: {}]
  %s1 = inlined_call_operand.hbm [shape: f32[2,8,32], index: 1, kind: input, shape index: {}]
  %s2 = inlined_call_operand.hbm [shape: f32[2,8,8], index: 2, kind: input, shape index: {}]
  %s3 = inlined_call_operand.vmem [shape: f32[1,32], index: 3, kind: input, shape index: {}]
  %s4 = inlined_call_operand.vmem [shape: f32[1,32], index: 4, kind: input, shape index: {}]
  %s5 = inlined_call_operand.hbm [shape: bf16[32,32], index: 5, kind: input, shape index: {}]
  %s6 = inlined_call_operand.vmem [shape: f32[1,32], index: 6, kind: input, shape index: {}]
  %s7 = inlined_call_operand.hbm [shape: bf16[32,32], index: 7, kind: input, shape index: {}]
  %s8 = inlined_call_operand.vmem [shape: f32[1,32], index: 8, kind: input, shape index: {}]
  %s9 = inlined_call_operand.hbm [shape: bf16[32,32], index: 9, kind: input, shape index: {}]
  %s10 = inlined_call_operand.vmem [shape: f32[1,32], index: 10, kind: input, shape index: {}]
  %s11 = inlined_call_operand.hbm [shape: bf16[32,32], index: 11, kind: input, shape index: {}]
  %s12 = inlined_call_operand.vmem [shape: f32[1,32], index: 12, kind: input, shape index: {}]
  %s13 = inlined_call_operand.hbm [shape: f32[2,8,32], index: 13, kind: output, shape index: {}]
  %s14 = sld [smem:[#allocation0]]
  $region105: #{tpu_custom_call.1} parent=0
    _
  %s16 = ssub.s32 1, %s14
  %s17 = scalar_select 0, %s16, %s14
  %18 = sst [smem:[#allocation3]] %s0
  $region1: #{tpu_custom_call.1} parent=0
    #allocation4 [shape = 'u8[8192]{0}', space=vmem, size = 0x2000, scoped, tag = 'input window, operand 1']
    #allocation5 [shape = 's32[2]{0}', space=sflag, size = 0x8, scoped, tag = 'scoped memory for tpu_custom_call.1']
    #allocation6 [shape = 's32[2]{0}', space=sflag, size = 0x8, scoped, tag = 'scoped memory for tpu_custom_call.1']
    #allocation7 [shape = 'u8[8192]{0}', space=vmem, size = 0x2000, scoped, tag = 'input window, operand 2']
    #allocation8 [shape = 's32[2]{0}', space=sflag, size = 0x8, scoped, tag = 'scoped memory for tpu_custom_call.1']
    #allocation9 [shape = 'u8[8192]{0}', space=vmem, size = 0x2000, scoped, tag = 'input window, operand 5, single buffered']
    #allocation10 [shape = 'u8[8192]{0}', space=vmem, size = 0x2000, scoped, tag = 'input window, operand 7, single buffered']
    #allocation11 [shape = 's32[1]{0}', space=sflag, size = 0x4, scoped, tag = 'scoped memory for tpu_custom_call.1']
    #allocation12 [shape = 'u8[8192]{0}', space=vmem, size = 0x2000, scoped, tag = 'input window, operand 9, single buffered']
    #allocation13 [shape = 'u8[8192]{0}', space=vmem, size = 0x2000, scoped, tag = 'input window, operand 11, single buffered']
    #allocation14 [shape = 's32[1]{0}', space=sflag, size = 0x4, scoped, tag = 'scoped memory for tpu_custom_call.1']
    #allocation15 [shape = 'u8[8192]{0}', space=vmem, size = 0x2000, scoped, tag = 'output window, operand 0']
    %19 = vsyncpa [#allocation5], 0
    %s20 = scalar_lea.sflag [#allocation5], 1
    %21 = vsyncpa %s20, 0
    %22 = vsyncpa [#allocation8], 0
    %s23 = scalar_lea.sflag [#allocation8], 1
    %24 = vsyncpa %s23, 0
    %25 = vsyncpa [#allocation11], 0
    %26 = vsyncpa [#allocation14], 0
    %27 = vsyncpa [#allocation6], 0
    %s28 = scalar_lea.sflag [#allocation6], 1
    %29 = vsyncpa %s28, 0
    loop: start=0, step=1, limit=4
    $region2: #{tpu_custom_call.1} parent=1 // loop_pre_header
      _
    $region3: #{tpu_custom_call.1} parent=1 // loop_header
      %s31 = sphi 0, %s35
      %p32 = scmp.ge.s32.totalorder %s31, 4
      %s41 = sphi 0, %s43
      %s44 = sphi 0, %s41
      %s45 = sphi 0, %s44
      %s61 = sphi 0, %s45
      %s67 = sphi 0, %s69
      %s70 = sphi 0, %s67
      %s71 = sphi 0, %s70
      %s87 = sphi 0, %s71
      %s91 = sphi 0, %s91
      %s93 = sphi 0, %s91
      %s94 = sphi 0, %s93
      %s108 = sphi 0, %s94
      %s112 = sphi 0, %s112
      %s114 = sphi 0, %s112
      %s115 = sphi 0, %s114
      %s129 = sphi 0, %s115
      %s133 = sphi 0, %s133
      %s135 = sphi 0, %s133
      %s136 = sphi 0, %s135
      %s150 = sphi 0, %s136
      %s154 = sphi 0, %s154
      %s156 = sphi 0, %s154
      %s157 = sphi 0, %s156
      %s171 = sphi 0, %s157
      %s175 = sphi 0, %s175
      %s177 = sphi 0, %s175
      %s178 = sphi 0, %s177
      %s192 = sphi 0, %s178
      %s196 = sphi 0, %s196
      %s198 = sphi 0, %s196
      %s199 = sphi 0, %s198
      %s213 = sphi 0, %s199
      %s217 = sphi 0, %s217
      %s219 = sphi 0, %s217
      %s220 = sphi 0, %s219
      %s234 = sphi 0, %s220
      %s238 = sphi 0, %s238
      %s240 = sphi 0, %s238
      %s241 = sphi 0, %s240
      %s255 = sphi 0, %s241
      %s259 = sphi 0, %s259
      %s261 = sphi 0, %s259
      %s262 = sphi 0, %s261
      %s276 = sphi 0, %s262
      %s280 = sphi 0, %s280
      %s282 = sphi 0, %s280
      %s283 = sphi 0, %s282
      %s297 = sphi 0, %s283
      %s303 = sphi 0, %s305
      %s306 = sphi 0, %s303
      %s307 = sphi 0, %s306
      %s323 = sphi 0, %s307
    $region4: #{tpu_custom_call.1} parent=1 // loop_header_branch
      %34 = sbr.rel (%p32) target = $region8
    $region5: #{tpu_custom_call.1} parent=1 // loop_body
      %s36 = ssub.s32 %s31, 1
      %s37 = ssub.s32 %s31, 2
      %s38 = sadd.s32 %s31, 1
      %s39 = ssub.s32 %s31, %s38
      %p40 = scmp.eq.s32.totalorder %s39, 0
      %s42 = sadd.s32 %s41, 1
      %s43 = scalar_select %p40, %s41, %s42
      %p46 = pneg %p40
      %p47 = scmp.eq.s32.totalorder %s31, 1
      %p48 = por %p46, %p47
      %p49 = scmp.ne.s32.totalorder %s41, %s44
      %p50 = scmp.eq.s32.totalorder %s31, 0
      %p51 = por %p49, %p50
      %p52 = scmp.ne.s32.totalorder %s41, %s44
      %p53 = scmp.eq.s32.totalorder %s36, 1
      %p54 = por %p52, %p53
      %p55 = scmp.ne.s32.totalorder %s44, %s45
      %p56 = scmp.eq.s32.totalorder %s36, 0
      %p57 = por %p55, %p56
      %p58 = scmp.ne.s32.totalorder %s44, %s45
      %p59 = scmp.eq.s32.totalorder %s37, 1
      %p60 = por %p58, %p59
      %p62 = scmp.ne.s32.totalorder %s45, %s61
      %p63 = scmp.eq.s32.totalorder %s37, 0
      %p64 = por %p62, %p63
      %s65 = ssub.s32 %s31, %s38
      %p66 = scmp.eq.s32.totalorder %s65, 0
      %s68 = sadd.s32 %s67, 1
      %s69 = scalar_select %p66, %s67, %s68
      %p72 = pneg %p66
      %p73 = scmp.eq.s32.totalorder %s31, 1
      %p74 = por %p72, %p73
      %p75 = scmp.ne.s32.totalorder %s67, %s70
      %p76 = scmp.eq.s32.totalorder %s31, 0
      %p77 = por %p75, %p76
      %p78 = scmp.ne.s32.totalorder %s67, %s70
      %p79 = scmp.eq.s32.totalorder %s36, 1
      %p80 = por %p78, %p79
      %p81 = scmp.ne.s32.totalorder %s70, %s71
      %p82 = scmp.eq.s32.totalorder %s36, 0
      %p83 = por %p81, %p82
      %p84 = scmp.ne.s32.totalorder %s70, %s71
      %p85 = scmp.eq.s32.totalorder %s37, 1
      %p86 = por %p84, %p85
      %p88 = scmp.ne.s32.totalorder %s71, %s87
      %p89 = scmp.eq.s32.totalorder %s37, 0
      %p90 = por %p88, %p89
      %s92 = sadd.s32 %s91, 1
      %p95 = scmp.eq.s32.totalorder %s31, 1
      %p96 = scmp.ne.s32.totalorder %s91, %s93
      %p97 = scmp.eq.s32.totalorder %s31, 0
      %p98 = por %p96, %p97
      %p99 = scmp.ne.s32.totalorder %s91, %s93
      %p100 = scmp.eq.s32.totalorder %s36, 1
      %p101 = por %p99, %p100
      %p102 = scmp.ne.s32.totalorder %s93, %s94
      %p103 = scmp.eq.s32.totalorder %s36, 0
      %p104 = por %p102, %p103
      %p105 = scmp.ne.s32.totalorder %s93, %s94
      %p106 = scmp.eq.s32.totalorder %s37, 1
      %p107 = por %p105, %p106
      %p109 = scmp.ne.s32.totalorder %s94, %s108
      %p110 = scmp.eq.s32.totalorder %s37, 0
      %p111 = por %p109, %p110
      %s113 = sadd.s32 %s112, 1
      %p116 = scmp.eq.s32.totalorder %s31, 1
      %p117 = scmp.ne.s32.totalorder %s112, %s114
      %p118 = scmp.eq.s32.totalorder %s31, 0
      %p119 = por %p117, %p118
      %p120 = scmp.ne.s32.totalorder %s112, %s114
      %p121 = scmp.eq.s32.totalorder %s36, 1
      %p122 = por %p120, %p121
      %p123 = scmp.ne.s32.totalorder %s114, %s115
      %p124 = scmp.eq.s32.totalorder %s36, 0
      %p125 = por %p123, %p124
      %p126 = scmp.ne.s32.totalorder %s114, %s115
      %p127 = scmp.eq.s32.totalorder %s37, 1
      %p128 = por %p126, %p127
      %p130 = scmp.ne.s32.totalorder %s115, %s129
      %p131 = scmp.eq.s32.totalorder %s37, 0
      %p132 = por %p130, %p131
      %s134 = sadd.s32 %s133, 1
      %p137 = scmp.eq.s32.totalorder %s31, 1
      %p138 = scmp.ne.s32.totalorder %s133, %s135
      %p139 = scmp.eq.s32.totalorder %s31, 0
      %p140 = por %p138, %p139
      %p141 = scmp.ne.s32.totalorder %s133, %s135
      %p142 = scmp.eq.s32.totalorder %s36, 1
      %p143 = por %p141, %p142
      %p144 = scmp.ne.s32.totalorder %s135, %s136
      %p145 = scmp.eq.s32.totalorder %s36, 0
      %p146 = por %p144, %p145
      %p147 = scmp.ne.s32.totalorder %s135, %s136
      %p148 = scmp.eq.s32.totalorder %s37, 1
      %p149 = por %p147, %p148
      %p151 = scmp.ne.s32.totalorder %s136, %s150
      %p152 = scmp.eq.s32.totalorder %s37, 0
      %p153 = por %p151, %p152
      %s155 = sadd.s32 %s154, 1
      %p158 = scmp.eq.s32.totalorder %s31, 1
      %p159 = scmp.ne.s32.totalorder %s154, %s156
      %p160 = scmp.eq.s32.totalorder %s31, 0
      %p161 = por %p159, %p160
      %p162 = scmp.ne.s32.totalorder %s154, %s156
      %p163 = scmp.eq.s32.totalorder %s36, 1
      %p164 = por %p162, %p163
      %p165 = scmp.ne.s32.totalorder %s156, %s157
      %p166 = scmp.eq.s32.totalorder %s36, 0
      %p167 = por %p165, %p166
      %p168 = scmp.ne.s32.totalorder %s156, %s157
      %p169 = scmp.eq.s32.totalorder %s37, 1
      %p170 = por %p168, %p169
      %p172 = scmp.ne.s32.totalorder %s157, %s171
      %p173 = scmp.eq.s32.totalorder %s37, 0
      %p174 = por %p172, %p173
      %s176 = sadd.s32 %s175, 1
      %p179 = scmp.eq.s32.totalorder %s31, 1
      %p180 = scmp.ne.s32.totalorder %s175, %s177
      %p181 = scmp.eq.s32.totalorder %s31, 0
      %p182 = por %p180, %p181
      %p183 = scmp.ne.s32.totalorder %s175, %s177
      %p184 = scmp.eq.s32.totalorder %s36, 1
      %p185 = por %p183, %p184
      %p186 = scmp.ne.s32.totalorder %s177, %s178
      %p187 = scmp.eq.s32.totalorder %s36, 0
      %p188 = por %p186, %p187
      %p189 = scmp.ne.s32.totalorder %s177, %s178
      %p190 = scmp.eq.s32.totalorder %s37, 1
      %p191 = por %p189, %p190
      %p193 = scmp.ne.s32.totalorder %s178, %s192
      %p194 = scmp.eq.s32.totalorder %s37, 0
      %p195 = por %p193, %p194
      %s197 = sadd.s32 %s196, 1
      %p200 = scmp.eq.s32.totalorder %s31, 1
      %p201 = scmp.ne.s32.totalorder %s196, %s198
      %p202 = scmp.eq.s32.totalorder %s31, 0
      %p203 = por %p201, %p202
      %p204 = scmp.ne.s32.totalorder %s196, %s198
      %p205 = scmp.eq.s32.totalorder %s36, 1
      %p206 = por %p204, %p205
      %p207 = scmp.ne.s32.totalorder %s198, %s199
      %p208 = scmp.eq.s32.totalorder %s36, 0
      %p209 = por %p207, %p208
      %p210 = scmp.ne.s32.totalorder %s198, %s199
      %p211 = scmp.eq.s32.totalorder %s37, 1
      %p212 = por %p210, %p211
      %p214 = scmp.ne.s32.totalorder %s199, %s213
      %p215 = scmp.eq.s32.totalorder %s37, 0
      %p216 = por %p214, %p215
      %s218 = sadd.s32 %s217, 1
      %p221 = scmp.eq.s32.totalorder %s31, 1
      %p222 = scmp.ne.s32.totalorder %s217, %s219
      %p223 = scmp.eq.s32.totalorder %s31, 0
      %p224 = por %p222, %p223
      %p225 = scmp.ne.s32.totalorder %s217, %s219
      %p226 = scmp.eq.s32.totalorder %s36, 1
      %p227 = por %p225, %p226
      %p228 = scmp.ne.s32.totalorder %s219, %s220
      %p229 = scmp.eq.s32.totalorder %s36, 0
      %p230 = por %p228, %p229
      %p231 = scmp.ne.s32.totalorder %s219, %s220
      %p232 = scmp.eq.s32.totalorder %s37, 1
      %p233 = por %p231, %p232
      %p235 = scmp.ne.s32.totalorder %s220, %s234
      %p236 = scmp.eq.s32.totalorder %s37, 0
      %p237 = por %p235, %p236
      %s239 = sadd.s32 %s238, 1
      %p242 = scmp.eq.s32.totalorder %s31, 1
      %p243 = scmp.ne.s32.totalorder %s238, %s240
      %p244 = scmp.eq.s32.totalorder %s31, 0
      %p245 = por %p243, %p244
      %p246 = scmp.ne.s32.totalorder %s238, %s240
      %p247 = scmp.eq.s32.totalorder %s36, 1
      %p248 = por %p246, %p247
      %p249 = scmp.ne.s32.totalorder %s240, %s241
      %p250 = scmp.eq.s32.totalorder %s36, 0
      %p251 = por %p249, %p250
      %p252 = scmp.ne.s32.totalorder %s240, %s241
      %p253 = scmp.eq.s32.totalorder %s37, 1
      %p254 = por %p252, %p253
      %p256 = scmp.ne.s32.totalorder %s241, %s255
      %p257 = scmp.eq.s32.totalorder %s37, 0
      %p258 = por %p256, %p257
      %s260 = sadd.s32 %s259, 1
      %p263 = scmp.eq.s32.totalorder %s31, 1
      %p264 = scmp.ne.s32.totalorder %s259, %s261
      %p265 = scmp.eq.s32.totalorder %s31, 0
      %p266 = por %p264, %p265
      %p267 = scmp.ne.s32.totalorder %s259, %s261
      %p268 = scmp.eq.s32.totalorder %s36, 1
      %p269 = por %p267, %p268
      %p270 = scmp.ne.s32.totalorder %s261, %s262
      %p271 = scmp.eq.s32.totalorder %s36, 0
      %p272 = por %p270, %p271
      %p273 = scmp.ne.s32.totalorder %s261, %s262
      %p274 = scmp.eq.s32.totalorder %s37, 1
      %p275 = por %p273, %p274
      %p277 = scmp.ne.s32.totalorder %s262, %s276
      %p278 = scmp.eq.s32.totalorder %s37, 0
      %p279 = por %p277, %p278
      %s281 = sadd.s32 %s280, 1
      %p284 = scmp.eq.s32.totalorder %s31, 1
      %p285 = scmp.ne.s32.totalorder %s280, %s282
      %p286 = scmp.eq.s32.totalorder %s31, 0
      %p287 = por %p285, %p286
      %p288 = scmp.ne.s32.totalorder %s280, %s282
      %p289 = scmp.eq.s32.totalorder %s36, 1
      %p290 = por %p288, %p289
      %p291 = scmp.ne.s32.totalorder %s282, %s283
      %p292 = scmp.eq.s32.totalorder %s36, 0
      %p293 = por %p291, %p292
      %p294 = scmp.ne.s32.totalorder %s282, %s283
      %p295 = scmp.eq.s32.totalorder %s37, 1
      %p296 = por %p294, %p295
      %p298 = scmp.ne.s32.totalorder %s283, %s297
      %p299 = scmp.eq.s32.totalorder %s37, 0
      %p300 = por %p298, %p299
      %s301 = ssub.s32 %s31, %s38
      %p302 = scmp.eq.s32.totalorder %s301, 0
      %s304 = sadd.s32 %s303, 1
      %s305 = scalar_select %p302, %s303, %s304
      %p308 = pneg %p302
      %p309 = scmp.eq.s32.totalorder %s31, 1
      %p310 = por %p308, %p309
      %p311 = scmp.ne.s32.totalorder %s303, %s306
      %p312 = scmp.eq.s32.totalorder %s31, 0
      %p313 = por %p311, %p312
      %p314 = scmp.ne.s32.totalorder %s303, %s306
      %p315 = scmp.eq.s32.totalorder %s36, 1
      %p316 = por %p314, %p315
      %p317 = scmp.ne.s32.totalorder %s306, %s307
      %p318 = scmp.eq.s32.totalorder %s36, 0
      %p319 = por %p317, %p318
      %p320 = scmp.ne.s32.totalorder %s306, %s307
      %p321 = scmp.eq.s32.totalorder %s37, 1
      %p322 = por %p320, %p321
      %p324 = scmp.ne.s32.totalorder %s307, %s323
      %p325 = scmp.eq.s32.totalorder %s37, 0
      %p326 = por %p324, %p325
      %p327 = scmp.le.s32.totalorder 1, %s31
      %p328 = scmp.lt.s32.totalorder %s31, 3
      %p329 = pnand %p327, %p328
      %p330 = pneg %p329
      // Predicated region
      $region9: #{tpu_custom_call.1} parent=5 // pred_check
        _
      $region10: #{tpu_custom_call.1} parent=5 // pred_check_branch
        %332 = sbr.rel (%p329) target = $region12
      $region11: #{tpu_custom_call.1} parent=5 // pred_region
        %s333 = ssub.s32 %s31, 1
        // Predicated region
        $region13: #{tpu_custom_call.1} parent=11 // pred_check
          %p334 = pneg %p104
        $region14: #{tpu_custom_call.1} parent=11 // pred_check_branch
          %336 = sbr.rel (%p334) target = $region16
        $region15: #{tpu_custom_call.1} parent=11 // pred_region
          _
        $region16: #{tpu_custom_call.1} parent=11 // pred_fallthru
          _
        // Predicated region
        $region17: #{tpu_custom_call.1} parent=11 // pred_check
          %p337 = pneg %p125
        $region18: #{tpu_custom_call.1} parent=11 // pred_check_branch
          %339 = sbr.rel (%p337) target = $region20
        $region19: #{tpu_custom_call.1} parent=11 // pred_region
          _
        $region20: #{tpu_custom_call.1} parent=11 // pred_fallthru
          _
        // Predicated region
        $region21: #{tpu_custom_call.1} parent=11 // pred_check
          %p340 = pneg %p146
        $region22: #{tpu_custom_call.1} parent=11 // pred_check_branch
          %342 = sbr.rel (%p340) target = $region24
        $region23: #{tpu_custom_call.1} parent=11 // pred_region
          %344 = vsyncadd [#allocation8], 0
          %s345 = sshll.u32 %s5, 4
          %s346 = int_to_ptr.hbm [resolvable:$true] %s345
          %s347 = sshll.u32 [#allocation9], 4
          %s348 = int_to_ptr.vmem [resolvable:$true] %s347
          %353 = dma.hbm_to_vmem [thread:$0]  %s346, 256, %s348, [#allocation8], 64, 64, 4
        $region24: #{tpu_custom_call.1} parent=11 // pred_fallthru
          _
        // Predicated region
        $region25: #{tpu_custom_call.1} parent=11 // pred_check
          %p354 = pneg %p167
        $region26: #{tpu_custom_call.1} parent=11 // pred_check_branch
          %356 = sbr.rel (%p354) target = $region28
        $region27: #{tpu_custom_call.1} parent=11 // pred_region
          _
        $region28: #{tpu_custom_call.1} parent=11 // pred_fallthru
          _
        // Predicated region
        $region29: #{tpu_custom_call.1} parent=11 // pred_check
          %p357 = pneg %p188
        $region30: #{tpu_custom_call.1} parent=11 // pred_check_branch
          %359 = sbr.rel (%p357) target = $region32
        $region31: #{tpu_custom_call.1} parent=11 // pred_region
          %361 = vsyncadd [#allocation11], 0
          %s362 = sshll.u32 %s7, 4
          %s363 = int_to_ptr.hbm [resolvable:$true] %s362
          %s364 = sshll.u32 [#allocation10], 4
          %s365 = int_to_ptr.vmem [resolvable:$true] %s364
          %370 = dma.hbm_to_vmem [thread:$0]  %s363, 256, %s365, [#allocation11], 64, 64, 4
        $region32: #{tpu_custom_call.1} parent=11 // pred_fallthru
          _
        // Predicated region
        $region33: #{tpu_custom_call.1} parent=11 // pred_check
          %p371 = pneg %p209
        $region34: #{tpu_custom_call.1} parent=11 // pred_check_branch
          %373 = sbr.rel (%p371) target = $region36
        $region35: #{tpu_custom_call.1} parent=11 // pred_region
          _
        $region36: #{tpu_custom_call.1} parent=11 // pred_fallthru
          _
        // Predicated region
        $region37: #{tpu_custom_call.1} parent=11 // pred_check
          %p374 = pneg %p230
        $region38: #{tpu_custom_call.1} parent=11 // pred_check_branch
          %376 = sbr.rel (%p374) target = $region40
        $region39: #{tpu_custom_call.1} parent=11 // pred_region
          %378 = vsyncadd [#allocation11], 0
          %s379 = sshll.u32 %s9, 4
          %s380 = int_to_ptr.hbm [resolvable:$true] %s379
          %s381 = sshll.u32 [#allocation12], 4
          %s382 = int_to_ptr.vmem [resolvable:$true] %s381
          %387 = dma.hbm_to_vmem [thread:$0]  %s380, 256, %s382, [#allocation11], 64, 64, 4
        $region40: #{tpu_custom_call.1} parent=11 // pred_fallthru
          _
        // Predicated region
        $region41: #{tpu_custom_call.1} parent=11 // pred_check
          %p388 = pneg %p251
        $region42: #{tpu_custom_call.1} parent=11 // pred_check_branch
          %390 = sbr.rel (%p388) target = $region44
        $region43: #{tpu_custom_call.1} parent=11 // pred_region
          _
        $region44: #{tpu_custom_call.1} parent=11 // pred_fallthru
          _
        // Predicated region
        $region45: #{tpu_custom_call.1} parent=11 // pred_check
          %p391 = pneg %p272
        $region46: #{tpu_custom_call.1} parent=11 // pred_check_branch
          %393 = sbr.rel (%p391) target = $region48
        $region47: #{tpu_custom_call.1} parent=11 // pred_region
          %395 = vsyncadd [#allocation14], 0
          %s396 = sshll.u32 %s11, 4
          %s397 = int_to_ptr.hbm [resolvable:$true] %s396
          %s398 = sshll.u32 [#allocation13], 4
          %s399 = int_to_ptr.vmem [resolvable:$true] %s398
          %404 = dma.hbm_to_vmem [thread:$0]  %s397, 256, %s399, [#allocation14], 64, 64, 4
        $region48: #{tpu_custom_call.1} parent=11 // pred_fallthru
          _
        // Predicated region
        $region49: #{tpu_custom_call.1} parent=11 // pred_check
          %p405 = pneg %p293
        $region50: #{tpu_custom_call.1} parent=11 // pred_check_branch
          %407 = sbr.rel (%p405) target = $region52
        $region51: #{tpu_custom_call.1} parent=11 // pred_region
          _
        $region52: #{tpu_custom_call.1} parent=11 // pred_fallthru
          _
      $region12: #{tpu_custom_call.1} parent=5 // pred_fallthru
        _
      %p408 = scmp.lt.s32.totalorder %s31, 2
      // Predicated region
      $region53: #{tpu_custom_call.1} parent=5 // pred_check
        %p409 = pneg %p408
      $region54: #{tpu_custom_call.1} parent=5 // pred_check_branch
        %411 = sbr.rel (%p409) target = $region56
      $region55: #{tpu_custom_call.1} parent=5 // pred_region
        // Predicated region
        $region57: #{tpu_custom_call.1} parent=55 // pred_check
          %p412 = pneg %p51
        $region58: #{tpu_custom_call.1} parent=55 // pred_check_branch
          %414 = sbr.rel (%p412) target = $region60
        $region59: #{tpu_custom_call.1} parent=55 // pred_region
          %s415 = sand.u32 %s41, 1
          %s416 = scalar_lea.sflag [#allocation5], %s415
          %s417 = sand.u32 %s41, 1
          %s418 = smul.addr %s417, 8
          %s419 = scalar_lea.vmem [#allocation4], %s418
          %421 = vsyncadd %s416, 0
          %s422 = smul.addr %s31, 8
          %s423 = scalar_lea.hbm %s1, %s422
          %s425 = sshll.u32 %s423, 4
          %s426 = int_to_ptr.hbm [resolvable:$true] %s425
          %s427 = sshll.u32 %s419, 4
          %s428 = int_to_ptr.vmem [resolvable:$true] %s427
          %430 = dma.hbm_to_vmem [thread:$0]  %s426, 128, %s428, %s416
        $region60: #{tpu_custom_call.1} parent=55 // pred_fallthru
          _
        // Predicated region
        $region61: #{tpu_custom_call.1} parent=55 // pred_check
          %p431 = pneg %p77
        $region62: #{tpu_custom_call.1} parent=55 // pred_check_branch
          %433 = sbr.rel (%p431) target = $region64
        $region63: #{tpu_custom_call.1} parent=55 // pred_region
          %s434 = sand.u32 %s31, 1
          %s435 = scalar_lea.sflag [#allocation8], %s434
          %s436 = sand.u32 %s67, 1
          %s437 = smul.addr %s436, 8
          %s438 = scalar_lea.vmem [#allocation7], %s437
          %440 = vsyncadd %s435, 0
          %s441 = smul.addr %s31, 8
          %s442 = scalar_lea.hbm %s2, %s441
          %s444 = sshll.u32 %s442, 4
          %s445 = int_to_ptr.hbm [resolvable:$true] %s444
          %s446 = sshll.u32 %s438, 4
          %s447 = int_to_ptr.vmem [resolvable:$true] %s446
          %449 = dma.hbm_to_vmem [thread:$0]  %s445, 128, %s447, %s435
        $region64: #{tpu_custom_call.1} parent=55 // pred_fallthru
          _
      $region56: #{tpu_custom_call.1} parent=5 // pred_fallthru
        _
      %p450 = scmp.le.s32.totalorder 1, %s31
      %p451 = scmp.lt.s32.totalorder %s31, 3
      %p452 = pnand %p450, %p451
      %p453 = pneg %p452
      // Predicated region
      $region65: #{tpu_custom_call.1} parent=5 // pred_check
        _
      $region66: #{tpu_custom_call.1} parent=5 // pred_check_branch
        %455 = sbr.rel (%p452) target = $region68
      $region67: #{tpu_custom_call.1} parent=5 // pred_region
        %s456 = ssub.s32 %s31, 1
        %s457 = sand.u32 %s44, 1
        %s458 = scalar_lea.sflag [#allocation5], %s457
        %s459 = sand.u32 %s44, 1
        %s460 = smul.addr %s459, 8
        %s461 = scalar_lea.vmem [#allocation4], %s460
        // Predicated region
        $region69: #{tpu_custom_call.1} parent=67 // pred_check
          %p462 = pneg %p57
        $region70: #{tpu_custom_call.1} parent=67 // pred_check_branch
          %464 = sbr.rel (%p462) target = $region72
        $region71: #{tpu_custom_call.1} parent=67 // pred_region
          %466 = dma.done %s458, 128
        $region72: #{tpu_custom_call.1} parent=67 // pred_fallthru
          _
        %s467 = sand.u32 %s36, 1
        %s468 = scalar_lea.sflag [#allocation8], %s467
        %s469 = sand.u32 %s70, 1
        %s470 = smul.addr %s469, 8
        %s471 = scalar_lea.vmem [#allocation7], %s470
        // Predicated region
        $region73: #{tpu_custom_call.1} parent=67 // pred_check
          %p472 = pneg %p83
        $region74: #{tpu_custom_call.1} parent=67 // pred_check_branch
          %474 = sbr.rel (%p472) target = $region76
        $region75: #{tpu_custom_call.1} parent=67 // pred_region
          %476 = dma.done %s468, 128
        $region76: #{tpu_custom_call.1} parent=67 // pred_fallthru
          _
        // Predicated region
        $region77: #{tpu_custom_call.1} parent=67 // pred_check
          %p477 = pneg %p146
        $region78: #{tpu_custom_call.1} parent=67 // pred_check_branch
          %479 = sbr.rel (%p477) target = $region80
        $region79: #{tpu_custom_call.1} parent=67 // pred_region
          %481 = dma.done [#allocation8], 256
        $region80: #{tpu_custom_call.1} parent=67 // pred_fallthru
          _
        // Predicated region
        $region81: #{tpu_custom_call.1} parent=67 // pred_check
          %p482 = pneg %p188
        $region82: #{tpu_custom_call.1} parent=67 // pred_check_branch
          %484 = sbr.rel (%p482) target = $region84
        $region83: #{tpu_custom_call.1} parent=67 // pred_region
          %486 = dma.done [#allocation11], 256
        $region84: #{tpu_custom_call.1} parent=67 // pred_fallthru
          _
        // Predicated region
        $region85: #{tpu_custom_call.1} parent=67 // pred_check
          %p487 = pneg %p230
        $region86: #{tpu_custom_call.1} parent=67 // pred_check_branch
          %489 = sbr.rel (%p487) target = $region88
        $region87: #{tpu_custom_call.1} parent=67 // pred_region
          %491 = dma.done [#allocation11], 256
        $region88: #{tpu_custom_call.1} parent=67 // pred_fallthru
          _
        // Predicated region
        $region89: #{tpu_custom_call.1} parent=67 // pred_check
          %p492 = pneg %p272
        $region90: #{tpu_custom_call.1} parent=67 // pred_check_branch
          %494 = sbr.rel (%p492) target = $region92
        $region91: #{tpu_custom_call.1} parent=67 // pred_region
          %496 = dma.done [#allocation14], 256
        $region92: #{tpu_custom_call.1} parent=67 // pred_fallthru
          _
        %s497 = sand.u32 %s44, 1
        %s498 = scalar_lea.sflag [#allocation5], %s497
        %s499 = sand.u32 %s44, 1
        %s500 = smul.addr %s499, 8
        %s501 = scalar_lea.vmem [#allocation4], %s500
        %p502 = pneg %p57
        %p503 = pneg %p54
        %s504 = sand.u32 %s36, 1
        %s505 = scalar_lea.sflag [#allocation8], %s504
        %s506 = sand.u32 %s70, 1
        %s507 = smul.addr %s506, 8
        %s508 = scalar_lea.vmem [#allocation7], %s507
        %p509 = pneg %p83
        %p510 = pneg %p80
        %p511 = pneg %p104
        %p512 = pneg %p101
        %p513 = pneg %p125
        %p514 = pneg %p122
        %p515 = pneg %p146
        %p516 = pneg %p143
        %p517 = pneg %p167
        %p518 = pneg %p164
        %p519 = pneg %p188
        %p520 = pneg %p185
        %p521 = pneg %p209
        %p522 = pneg %p206
        %p523 = pneg %p230
        %p524 = pneg %p227
        %p525 = pneg %p251
        %p526 = pneg %p248
        %p527 = pneg %p272
        %p528 = pneg %p269
        %p529 = pneg %p293
        %p530 = pneg %p290
        %p531 = pneg %p319
        %p532 = pneg %p316
        %s533 = sand.u32 %s306, 1
        %s534 = scalar_lea.sflag [#allocation6], %s533
        %s535 = sand.u32 %s306, 1
        %s536 = smul.addr %s535, 8
        %s537 = scalar_lea.vmem [#allocation15], %s536
        %v539 = vld [vmem:[%s461] sm:$0xff]
        %v540 = vld [vmem:[%s3] sm:$0x1]
        %v541 = vld [vmem:[%s4] sm:$0x1]
        %vm542 = vcmask 261120
        %v543 = vsel %vm542, %v539, 0.0
        %544 = vadd.xlane.f32.xlu0 %v543
        %v545 = vpop.xlane.xlu0 %544
        %v546 = vrcp.pop 32.0
        %v547 = vmul.f32 32.0, %v546
        %v548 = vsub.f32 1.0, %v547
        %v549 = vmul.f32 %v546, %v548
        %v550 = vadd.f32 %v546, %v549
        %vm551 = vweird.f32 %v546
        %v552 = vsel %vm551, %v546, %v550
        %v553 = vmul.f32 %v545, %v552
        %v554 = vsub.f32 %v539, %v553
        %v555 = vmul.f32 %v554, %v554
        %v556 = vsel %vm542, %v555, 0.0
        %557 = vadd.xlane.f32.xlu0 %v556
        %v558 = vpop.xlane.xlu0 %557
        %v559 = vmul.f32 %v558, %v552
        %v560 = vadd.f32 %v559, 1e-06
        %v561 = vrsqrt.pop %v560
        %v562 = vmul.f32 %v561, %v560
        %v563 = vmul.f32 %v562, %v561
        %v564 = vmul.f32 0.5, %v563
        %v565 = vsub.f32 1.5, %v564
        %v566 = vmul.f32 %v561, %v565
        %vm567 = vweird.f32 %v560
        %vm568 = vweird.f32 %v561
        %vm569 = vmor %vm567, %vm568
        %v570 = vsel %vm569, %v561, %v566
        %v571 = vmul.f32 %v554, %v570
        %v573 = vperm.slane %v540, 0
        %v575 = vmul.f32 %v573, %v571
        %v577 = vperm.slane %v541, 0
        %v579 = vadd.f32 %v575, %v577
        %v580 = vpack.c.bf16 %v579, %v579
        %v581 = vld [vmem:[#allocation9] sm:$0xf]
        %v582 = vld [vmem:[#allocation9 + $0x4] sm:$0xf]
        %v583 = vld [vmem:[#allocation9 + $0x8] sm:$0xf]
        %v584 = vld [vmem:[#allocation9 + $0xc] sm:$0xf]
        %v585 = vld [vmem:[%s6] sm:$0x1]
        %v587 = vperm.slane %v585, 0
        %v593 = vunpack.c.l.b16 %v581
        %v594 = vunpack.c.l.b16 %v582
        %v595 = vunpack.c.l.b16 %v583
        %v596 = vunpack.c.l.b16 %v584
        %v597 = vpack.c.b16 %v594, %v593
        %v598 = vpack.c.b16 %v596, %v595
        %v602 = vsel %vm542, %v580, 0
        %604 = vmatpush.bf16.msra.mxu0 0
        %605 = vmatpush.bf16.msra.mxu0 0
        %606 = vmatpush.bf16.msra.mxu0 0
        %607 = vmatpush.bf16.msra.mxu0 0
        %608 = vmatpush.bf16.msra.mxu0 0
        %609 = vmatpush.bf16.msra.mxu0 0
        %610 = vmatpush.bf16.msra.mxu0 %v598
        %611 = vmatpush.bf16.msra.mxu0 %v597
        %612 = vmatmul.bf16.gmra.mxu0 %v602
        %v613 = vpop.f32.mrf.mxu0
        %v614 = vadd.f32 %v587, %v613
        %v615 = vpop.f32.mrf.mxu0
        %616 = vdwg.mxu0
        %v617 = vld [vmem:[#allocation10] sm:$0xf]
        %v618 = vld [vmem:[#allocation10 + $0x4] sm:$0xf]
        %v619 = vld [vmem:[#allocation10 + $0x8] sm:$0xf]
        %v620 = vld [vmem:[#allocation10 + $0xc] sm:$0xf]
        %v621 = vld [vmem:[%s8] sm:$0x1]
        %v623 = vperm.slane %v621, 0
        %v629 = vunpack.c.l.b16 %v617
        %v630 = vunpack.c.l.b16 %v618
        %v631 = vunpack.c.l.b16 %v619
        %v632 = vunpack.c.l.b16 %v620
        %v633 = vpack.c.b16 %v630, %v629
        %v634 = vpack.c.b16 %v632, %v631
        %637 = vmatpush.bf16.msra.mxu0 0
        %638 = vmatpush.bf16.msra.mxu0 0
        %639 = vmatpush.bf16.msra.mxu0 0
        %640 = vmatpush.bf16.msra.mxu0 0
        %641 = vmatpush.bf16.msra.mxu0 0
        %642 = vmatpush.bf16.msra.mxu0 0
        %643 = vmatpush.bf16.msra.mxu0 %v634
        %644 = vmatpush.bf16.msra.mxu0 %v633
        %645 = vmatmul.bf16.gmra.mxu0 %v602
        %v646 = vpop.f32.mrf.mxu0
        %v647 = vadd.f32 %v623, %v646
        %v648 = vpop.f32.mrf.mxu0
        %649 = vdwg.mxu0
        %v650 = vld [vmem:[#allocation12] sm:$0xf]
        %v651 = vld [vmem:[#allocation12 + $0x4] sm:$0xf]
        %v652 = vld [vmem:[#allocation12 + $0x8] sm:$0xf]
        %v653 = vld [vmem:[#allocation12 + $0xc] sm:$0xf]
        %v654 = vld [vmem:[%s10] sm:$0x1]
        %v656 = vperm.slane %v654, 0
        %v662 = vunpack.c.l.b16 %v650
        %v663 = vunpack.c.l.b16 %v651
        %v664 = vunpack.c.l.b16 %v652
        %v665 = vunpack.c.l.b16 %v653
        %v666 = vpack.c.b16 %v663, %v662
        %v667 = vpack.c.b16 %v665, %v664
        %670 = vmatpush.bf16.msra.mxu0 0
        %671 = vmatpush.bf16.msra.mxu0 0
        %672 = vmatpush.bf16.msra.mxu0 0
        %673 = vmatpush.bf16.msra.mxu0 0
        %674 = vmatpush.bf16.msra.mxu0 0
        %675 = vmatpush.bf16.msra.mxu0 0
        %676 = vmatpush.bf16.msra.mxu0 %v667
        %677 = vmatpush.bf16.msra.mxu0 %v666
        %678 = vmatmul.bf16.gmra.mxu0 %v602
        %v679 = vpop.f32.mrf.mxu0
        %v680 = vadd.f32 %v656, %v679
        %v681 = vpop.f32.mrf.mxu0
        %682 = vdwg.mxu0
        %v683 = vld [vmem:[%s471] sm:$0xff]
        %v684 = vpack.c.bf16 %v614, %v614
        %v685 = vpack.c.bf16 %v647, %v647
        %v686 = vpack.c.bf16 %v680, %v680
        %vm687 = vcmask 64512
        %v689 = vsel %vm687, %v684, 0
        %v692 = vsel %vm687, %v685, 0
        %694 = vmatpush.bf16.xpose.msra.mxu0 0
        %695 = vmatpush.bf16.xpose.msra.mxu0 0
        %696 = vmatpush.bf16.xpose.msra.mxu0 0
        %697 = vmatpush.bf16.xpose.msra.mxu0 0
        %698 = vmatpush.bf16.xpose.msra.mxu0 0
        %699 = vmatpush.bf16.xpose.msra.mxu0 0
        %700 = vmatpush.bf16.xpose.msra.mxu0 0
        %701 = vmatpush.bf16.xpose.msra.mxu0 %v692
        %702 = vmatmul.bf16.gmra.mxu0 %v689
        %v703 = vpop.f32.mrf.mxu0
        %v704 = vadd.f32 0.0, %v703
        %v705 = vpop.f32.mrf.mxu0
        %706 = vdwg.mxu0
        %v707 = vmul.f32 %v704, 0.35355338
        %vm708 = vcmp.gt.f32.partialorder %v683, 0.0
        %v709 = vsel %vm708, %v707, -1e+09
        %v710 = vsel %vm687, %v709, -inf
        %711 = vmax.xlane.f32.xlu0 %v710
        %v712 = vpop.xlane.xlu0 %711
        %v713 = vsub.f32 %v709, %v712
        %v714 = vmul.f32 %v713, 1.442695
        %v715 = vpow.pop %v714
        %v716 = vsel %vm687, %v715, 0.0
        %717 = vadd.xlane.f32.xlu0 %v716
        %v718 = vpop.xlane.xlu0 %717
        %v719 = vrcp.pop %v718
        %v720 = vmul.f32 %v718, %v719
        %v721 = vsub.f32 1.0, %v720
        %v722 = vmul.f32 %v719, %v721
        %v723 = vadd.f32 %v719, %v722
        %vm724 = vweird.f32 %v718
        %vm725 = vweird.f32 %v719
        %vm726 = vmor %vm724, %vm725
        %v727 = vsel %vm726, %v719, %v723
        %v728 = vand.u32 2147483647, %v718
        %vm729 = vcmp.eq.f32.partialorder %v728, 8.507059e+37
        %v730 = vand.u32 %v718, 2147483648
        %v731 = vor.u32 1.1754944e-38, %v730
        %v732 = vsel %vm729, %v731, %v727
        %v733 = vmul.f32 %v715, %v732
        %v734 = vpack.c.bf16 %v733, %v733
        %v736 = vsel %vm687, %v734, 0
        %vm738 = vcmask 1043456
        %v740 = vsel %vm738, %v686, 0
        %742 = vmatpush.bf16.msra.mxu0 0
        %743 = vmatpush.bf16.msra.mxu0 0
        %744 = vmatpush.bf16.msra.mxu0 0
        %745 = vmatpush.bf16.msra.mxu0 0
        %746 = vmatpush.bf16.msra.mxu0 0
        %747 = vmatpush.bf16.msra.mxu0 0
        %748 = vmatpush.bf16.msra.mxu0 0
        %749 = vmatpush.bf16.msra.mxu0 %v740
        %750 = vmatmul.bf16.gmra.mxu0 %v736
        %v751 = vpop.f32.mrf.mxu0
        %v752 = vadd.f32 0.0, %v751
        %v753 = vpop.f32.mrf.mxu0
        %754 = vdwg.mxu0
        %v755 = vpack.c.bf16 %v752, %v752
        %v756 = vld [vmem:[#allocation13] sm:$0xf]
        %758 = vrot.lane.b32.xlu0 %v684, 120
        %v759 = vpop.permute.xlu0 %758
        %761 = vrot.lane.b32.xlu0 %v685, 120
        %v762 = vpop.permute.xlu0 %761
        %v764 = vsel %vm687, %v759, 0
        %v767 = vsel %vm687, %v762, 0
        %769 = vmatpush.bf16.xpose.msra.mxu0 0
        %770 = vmatpush.bf16.xpose.msra.mxu0 0
        %771 = vmatpush.bf16.xpose.msra.mxu0 0
        %772 = vmatpush.bf16.xpose.msra.mxu0 0
        %773 = vmatpush.bf16.xpose.msra.mxu0 0
        %774 = vmatpush.bf16.xpose.msra.mxu0 0
        %775 = vmatpush.bf16.xpose.msra.mxu0 0
        %776 = vmatpush.bf16.xpose.msra.mxu0 %v767
        %777 = vmatmul.bf16.gmra.mxu0 %v764
        %v778 = vpop.f32.mrf.mxu0
        %v779 = vadd.f32 0.0, %v778
        %v780 = vpop.f32.mrf.mxu0
        %781 = vdwg.mxu0
        %v782 = vmul.f32 %v779, 0.35355338
        %v783 = vsel %vm708, %v782, -1e+09
        %v784 = vsel %vm687, %v783, -inf
        %785 = vmax.xlane.f32.xlu0 %v784
        %v786 = vpop.xlane.xlu0 %785
        %v787 = vsub.f32 %v783, %v786
        %v788 = vmul.f32 %v787, 1.442695
        %v789 = vpow.pop %v788
        %v790 = vsel %vm687, %v789, 0.0
        %791 = vadd.xlane.f32.xlu0 %v790
        %v792 = vpop.xlane.xlu0 %791
        %v793 = vrcp.pop %v792
        %v794 = vmul.f32 %v792, %v793
        %v795 = vsub.f32 1.0, %v794
        %v796 = vmul.f32 %v793, %v795
        %v797 = vadd.f32 %v793, %v796
        %vm798 = vweird.f32 %v792
        %vm799 = vweird.f32 %v793
        %vm800 = vmor %vm798, %vm799
        %v801 = vsel %vm800, %v793, %v797
        %v802 = vand.u32 2147483647, %v792
        %vm803 = vcmp.eq.f32.partialorder %v802, 8.507059e+37
        %v804 = vand.u32 %v792, 2147483648
        %v805 = vor.u32 1.1754944e-38, %v804
        %v806 = vsel %vm803, %v805, %v801
        %v807 = vmul.f32 %v789, %v806
        %v808 = vpack.c.bf16 %v807, %v807
        %810 = vrot.lane.b32.xlu0 %v686, 120
        %v811 = vpop.permute.xlu0 %810
        %v813 = vsel %vm687, %v808, 0
        %v816 = vsel %vm738, %v811, 0
        %818 = vmatpush.bf16.msra.mxu0 0
        %819 = vmatpush.bf16.msra.mxu0 0
        %820 = vmatpush.bf16.msra.mxu0 0
        %821 = vmatpush.bf16.msra.mxu0 0
        %822 = vmatpush.bf16.msra.mxu0 0
        %823 = vmatpush.bf16.msra.mxu0 0
        %824 = vmatpush.bf16.msra.mxu0 0
        %825 = vmatpush.bf16.msra.mxu0 %v816
        %826 = vmatmul.bf16.gmra.mxu0 %v813
        %v827 = vpop.f32.mrf.mxu0
        %v828 = vadd.f32 0.0, %v827
        %v829 = vpop.f32.mrf.mxu0
        %830 = vdwg.mxu0
        %v831 = vpack.c.bf16 %v828, %v828
        %v832 = vld [vmem:[#allocation13 + $0x4] sm:$0xf]
        %v834 = vsel %vm687, %v831, 0
        %v837 = vsel %vm738, %v832, 0
        %839 = vmatpush.bf16.msra.mxu0 0
        %840 = vmatpush.bf16.msra.mxu0 0
        %841 = vmatpush.bf16.msra.mxu0 0
        %842 = vmatpush.bf16.msra.mxu0 0
        %843 = vmatpush.bf16.msra.mxu0 0
        %844 = vmatpush.bf16.msra.mxu0 0
        %845 = vmatpush.bf16.msra.mxu0 0
        %846 = vmatpush.bf16.msra.mxu0 %v837
        %847 = vmatmul.bf16.gmra.mxu0 %v834
        %v848 = vpop.f32.mrf.mxu0
        %v849 = vadd.f32 0.0, %v848
        %v850 = vpop.f32.mrf.mxu0
        %851 = vdwg.mxu0
        %v853 = vsel %vm687, %v755, 0
        %v856 = vsel %vm738, %v756, 0
        %858 = vmatpush.bf16.msra.mxu0 0
        %859 = vmatpush.bf16.msra.mxu0 0
        %860 = vmatpush.bf16.msra.mxu0 0
        %861 = vmatpush.bf16.msra.mxu0 0
        %862 = vmatpush.bf16.msra.mxu0 0
        %863 = vmatpush.bf16.msra.mxu0 0
        %864 = vmatpush.bf16.msra.mxu0 0
        %865 = vmatpush.bf16.msra.mxu0 %v856
        %866 = vmatmul.bf16.gmra.mxu0 %v853
        %v867 = vpop.f32.mrf.mxu0
        %v868 = vadd.f32 %v849, %v867
        %v869 = vpop.f32.mrf.mxu0
        %870 = vdwg.mxu0
        %871 = vrot.lane.b32.xlu0 %v684, 112
        %v872 = vpop.permute.xlu0 %871
        %873 = vrot.lane.b32.xlu0 %v685, 112
        %v874 = vpop.permute.xlu0 %873
        %v876 = vsel %vm687, %v872, 0
        %v879 = vsel %vm687, %v874, 0
        %881 = vmatpush.bf16.xpose.msra.mxu0 0
        %882 = vmatpush.bf16.xpose.msra.mxu0 0
        %883 = vmatpush.bf16.xpose.msra.mxu0 0
        %884 = vmatpush.bf16.xpose.msra.mxu0 0
        %885 = vmatpush.bf16.xpose.msra.mxu0 0
        %886 = vmatpush.bf16.xpose.msra.mxu0 0
        %887 = vmatpush.bf16.xpose.msra.mxu0 0
        %888 = vmatpush.bf16.xpose.msra.mxu0 %v879
        %889 = vmatmul.bf16.gmra.mxu0 %v876
        %v890 = vpop.f32.mrf.mxu0
        %v891 = vadd.f32 0.0, %v890
        %v892 = vpop.f32.mrf.mxu0
        %893 = vdwg.mxu0
        %v894 = vmul.f32 %v891, 0.35355338
        %v895 = vsel %vm708, %v894, -1e+09
        %v896 = vsel %vm687, %v895, -inf
        %897 = vmax.xlane.f32.xlu0 %v896
        %v898 = vpop.xlane.xlu0 %897
        %v899 = vsub.f32 %v895, %v898
        %v900 = vmul.f32 %v899, 1.442695
        %v901 = vpow.pop %v900
        %v902 = vsel %vm687, %v901, 0.0
        %903 = vadd.xlane.f32.xlu0 %v902
        %v904 = vpop.xlane.xlu0 %903
        %v905 = vrcp.pop %v904
        %v906 = vmul.f32 %v904, %v905
        %v907 = vsub.f32 1.0, %v906
        %v908 = vmul.f32 %v905, %v907
        %v909 = vadd.f32 %v905, %v908
        %vm910 = vweird.f32 %v904
        %vm911 = vweird.f32 %v905
        %vm912 = vmor %vm910, %vm911
        %v913 = vsel %vm912, %v905, %v909
        %v914 = vand.u32 2147483647, %v904
        %vm915 = vcmp.eq.f32.partialorder %v914, 8.507059e+37
        %v916 = vand.u32 %v904, 2147483648
        %v917 = vor.u32 1.1754944e-38, %v916
        %v918 = vsel %vm915, %v917, %v913
        %v919 = vmul.f32 %v901, %v918
        %v920 = vpack.c.bf16 %v919, %v919
        %921 = vrot.lane.b32.xlu0 %v686, 112
        %v922 = vpop.permute.xlu0 %921
        %v924 = vsel %vm687, %v920, 0
        %v927 = vsel %vm738, %v922, 0
        %929 = vmatpush.bf16.msra.mxu0 0
        %930 = vmatpush.bf16.msra.mxu0 0
        %931 = vmatpush.bf16.msra.mxu0 0
        %932 = vmatpush.bf16.msra.mxu0 0
        %933 = vmatpush.bf16.msra.mxu0 0
        %934 = vmatpush.bf16.msra.mxu0 0
        %935 = vmatpush.bf16.msra.mxu0 0
        %936 = vmatpush.bf16.msra.mxu0 %v927
        %937 = vmatmul.bf16.gmra.mxu0 %v924
        %v938 = vpop.f32.mrf.mxu0
        %v939 = vadd.f32 0.0, %v938
        %v940 = vpop.f32.mrf.mxu0
        %941 = vdwg.mxu0
        %v942 = vpack.c.bf16 %v939, %v939
        %v943 = vld [vmem:[#allocation13 + $0x8] sm:$0xf]
        %v945 = vsel %vm687, %v942, 0
        %v948 = vsel %vm738, %v943, 0
        %950 = vmatpush.bf16.msra.mxu0 0
        %951 = vmatpush.bf16.msra.mxu0 0
        %952 = vmatpush.bf16.msra.mxu0 0
        %953 = vmatpush.bf16.msra.mxu0 0
        %954 = vmatpush.bf16.msra.mxu0 0
        %955 = vmatpush.bf16.msra.mxu0 0
        %956 = vmatpush.bf16.msra.mxu0 0
        %957 = vmatpush.bf16.msra.mxu0 %v948
        %958 = vmatmul.bf16.gmra.mxu0 %v945
        %v959 = vpop.f32.mrf.mxu0
        %v960 = vadd.f32 0.0, %v959
        %v961 = vpop.f32.mrf.mxu0
        %962 = vdwg.mxu0
        %v963 = vadd.f32 %v868, %v960
        %964 = vrot.lane.b32.xlu0 %v684, 104
        %v965 = vpop.permute.xlu0 %964
        %966 = vrot.lane.b32.xlu0 %v685, 104
        %v967 = vpop.permute.xlu0 %966
        %v969 = vsel %vm687, %v965, 0
        %v972 = vsel %vm687, %v967, 0
        %974 = vmatpush.bf16.xpose.msra.mxu0 0
        %975 = vmatpush.bf16.xpose.msra.mxu0 0
        %976 = vmatpush.bf16.xpose.msra.mxu0 0
        %977 = vmatpush.bf16.xpose.msra.mxu0 0
        %978 = vmatpush.bf16.xpose.msra.mxu0 0
        %979 = vmatpush.bf16.xpose.msra.mxu0 0
        %980 = vmatpush.bf16.xpose.msra.mxu0 0
        %981 = vmatpush.bf16.xpose.msra.mxu0 %v972
        %982 = vmatmul.bf16.gmra.mxu0 %v969
        %v983 = vpop.f32.mrf.mxu0
        %v984 = vadd.f32 0.0, %v983
        %v985 = vpop.f32.mrf.mxu0
        %986 = vdwg.mxu0
        %v987 = vmul.f32 %v984, 0.35355338
        %v988 = vsel %vm708, %v987, -1e+09
        %v989 = vsel %vm687, %v988, -inf
        %990 = vmax.xlane.f32.xlu0 %v989
        %v991 = vpop.xlane.xlu0 %990
        %v992 = vsub.f32 %v988, %v991
        %v993 = vmul.f32 %v992, 1.442695
        %v994 = vpow.pop %v993
        %v995 = vsel %vm687, %v994, 0.0
        %996 = vadd.xlane.f32.xlu0 %v995
        %v997 = vpop.xlane.xlu0 %996
        %v998 = vrcp.pop %v997
        %v999 = vmul.f32 %v997, %v998
        %v1000 = vsub.f32 1.0, %v999
        %v1001 = vmul.f32 %v998, %v1000
        %v1002 = vadd.f32 %v998, %v1001
        %vm1003 = vweird.f32 %v997
        %vm1004 = vweird.f32 %v998
        %vm1005 = vmor %vm1003, %vm1004
        %v1006 = vsel %vm1005, %v998, %v1002
        %v1007 = vand.u32 2147483647, %v997
        %vm1008 = vcmp.eq.f32.partialorder %v1007, 8.507059e+37
        %v1009 = vand.u32 %v997, 2147483648
        %v1010 = vor.u32 1.1754944e-38, %v1009
        %v1011 = vsel %vm1008, %v1010, %v1006
        %v1012 = vmul.f32 %v994, %v1011
        %v1013 = vpack.c.bf16 %v1012, %v1012
        %1014 = vrot.lane.b32.xlu0 %v686, 104
        %v1015 = vpop.permute.xlu0 %1014
        %v1017 = vsel %vm687, %v1013, 0
        %v1020 = vsel %vm738, %v1015, 0
        %1022 = vmatpush.bf16.msra.mxu0 0
        %1023 = vmatpush.bf16.msra.mxu0 0
        %1024 = vmatpush.bf16.msra.mxu0 0
        %1025 = vmatpush.bf16.msra.mxu0 0
        %1026 = vmatpush.bf16.msra.mxu0 0
        %1027 = vmatpush.bf16.msra.mxu0 0
        %1028 = vmatpush.bf16.msra.mxu0 0
        %1029 = vmatpush.bf16.msra.mxu0 %v1020
        %1030 = vmatmul.bf16.gmra.mxu0 %v1017
        %v1031 = vpop.f32.mrf.mxu0
        %v1032 = vadd.f32 0.0, %v1031
        %v1033 = vpop.f32.mrf.mxu0
        %1034 = vdwg.mxu0
        %v1035 = vpack.c.bf16 %v1032, %v1032
        %v1036 = vld [vmem:[#allocation13 + $0xc] sm:$0xf]
        %v1038 = vsel %vm687, %v1035, 0
        %v1041 = vsel %vm738, %v1036, 0
        %1043 = vmatpush.bf16.msra.mxu0 0
        %1044 = vmatpush.bf16.msra.mxu0 0
        %1045 = vmatpush.bf16.msra.mxu0 0
        %1046 = vmatpush.bf16.msra.mxu0 0
        %1047 = vmatpush.bf16.msra.mxu0 0
        %1048 = vmatpush.bf16.msra.mxu0 0
        %1049 = vmatpush.bf16.msra.mxu0 0
        %1050 = vmatpush.bf16.msra.mxu0 %v1041
        %1051 = vmatmul.bf16.gmra.mxu0 %v1038
        %v1052 = vpop.f32.mrf.mxu0
        %v1053 = vadd.f32 0.0, %v1052
        %v1054 = vpop.f32.mrf.mxu0
        %1055 = vdwg.mxu0
        %v1056 = vadd.f32 %v963, %v1053
        %v1057 = vld [vmem:[%s12] sm:$0x1]
        %v1059 = vperm.slane %v1057, 0
        %v1061 = vadd.f32 %v1056, %v1059
        %v1062 = vadd.f32 %v539, %v1061
        %1063 = vst.msk [vmem:[%s537] sm:$0xff] %vm542, %v1062
        %s1064 = sand.u32 %s306, 1
        %s1065 = scalar_lea.sflag [#allocation6], %s1064
        %s1066 = sand.u32 %s306, 1
        %s1067 = smul.addr %s1066, 8
        %s1068 = scalar_lea.vmem [#allocation15], %s1067
        // Predicated region
        $region93: #{tpu_custom_call.1} parent=67 // pred_check
          %p1069 = pneg %p316
        $region94: #{tpu_custom_call.1} parent=67 // pred_check_branch
          %1071 = sbr.rel (%p1069) target = $region96
        $region95: #{tpu_custom_call.1} parent=67 // pred_region
          %1073 = vsyncadd %s1065, 0
          %s1074 = smul.addr %s36, 8
          %s1075 = scalar_lea.hbm %s13, %s1074
          %s1077 = sshll.u32 %s1068, 4
          %s1078 = int_to_ptr.vmem [resolvable:$true] %s1077
          %s1079 = sshll.u32 %s1075, 4
          %s1080 = int_to_ptr.hbm [resolvable:$true] %s1079
          %1082 = dma.vmem_to_hbm [thread:$0]  %s1078, 128, %s1080, %s1065
        $region96: #{tpu_custom_call.1} parent=67 // pred_fallthru
          _
      $region68: #{tpu_custom_call.1} parent=5 // pred_fallthru
        _
      %p1083 = scmp.le.s32.totalorder 2, %s31
      // Predicated region
      $region97: #{tpu_custom_call.1} parent=5 // pred_check
        %p1084 = pneg %p1083
      $region98: #{tpu_custom_call.1} parent=5 // pred_check_branch
        %1086 = sbr.rel (%p1084) target = $region100
      $region99: #{tpu_custom_call.1} parent=5 // pred_region
        %s1087 = ssub.s32 %s31, 2
        // Predicated region
        $region101: #{tpu_custom_call.1} parent=99 // pred_check
          %p1088 = pneg %p322
        $region102: #{tpu_custom_call.1} parent=99 // pred_check_branch
          %1090 = sbr.rel (%p1088) target = $region104
        $region103: #{tpu_custom_call.1} parent=99 // pred_region
          %s1091 = sand.u32 %s307, 1
          %s1092 = scalar_lea.sflag [#allocation6], %s1091
          %s1093 = sand.u32 %s307, 1
          %s1094 = smul.addr %s1093, 8
          %s1095 = scalar_lea.vmem [#allocation15], %s1094
          %1097 = dma.done %s1092, 128
        $region104: #{tpu_custom_call.1} parent=99 // pred_fallthru
          _
      $region100: #{tpu_custom_call.1} parent=5 // pred_fallthru
        _
    $region6: #{tpu_custom_call.1} parent=1 // loop_footer
      %s35 = sadd.s32 1, %s31
    $region7: #{tpu_custom_call.1} parent=1 // loop_footer_branch
      %30 = sbr.rel target = $region3
    $region8: #{tpu_custom_call.1} parent=1 // loop_exit
      _
    %1098 = vsyncpa [#allocation5], 1
    %s1099 = scalar_lea.sflag [#allocation5], 1
    %1100 = vsyncpa %s1099, 1
    %1101 = vsyncpa [#allocation8], 1
    %s1102 = scalar_lea.sflag [#allocation8], 1
    %1103 = vsyncpa %s1102, 1
    %1104 = vsyncpa [#allocation11], 1
    %1105 = vsyncpa [#allocation14], 1
    %1106 = vsyncpa [#allocation6], 1
    %s1107 = scalar_lea.sflag [#allocation6], 1
    %1108 = vsyncpa %s1107, 1

</llo_original>
